<compile_context>
chip_gen: v6e
topology: v6e:2x2x1
jax: 0.10.0
libtpu: 0.0.40
codegen_flags: <defaults>
</compile_context>

<pallas_src>
import math

import jax
import jax.numpy as jnp
import numpy as np
from jax.experimental import pallas as pl
from jax.experimental.pallas import tpu as pltpu


# ----------------------------------------------------------------------------
# Fused kernel: encoder + attention + context + MLP head for one batch tile
# ----------------------------------------------------------------------------
def _layernorm(v, g, b):
    mu = jnp.mean(v, axis=-1, keepdims=True)
    var = jnp.mean(jnp.square(v - mu), axis=-1, keepdims=True)
    return (v - mu) * jax.lax.rsqrt(var + 1e-5) * g + b


def _fused_kernel(state_ref,
                  w1bd_ref, b1_ref, w2bd_ref, b2_ref,          # block-diag asset encoder
                  wabd_ref, ab_ref, wvbd_ref, bv_ref,          # block-diag attention/value
                  expand_ref,                                  # [A, A*O] 0/1 expander
                  w1e_ref, w1c_ref, w1s_ref, fb1_ref,          # row-split fc1
                  g1_ref, be1_ref,
                  w2_ref, fb2_ref, g2_ref, be2_ref,            # fc2 + ln2
                  w3_ref, fb3_ref,                             # fc3 (lane-padded)
                  out_ref):
    st = state_ref[...]                                                 # [TB, S]

    # --- AssetEncoder: relu(fc1), relu(fc2) over all assets at once (lane-dense)
    h = jnp.dot(st, w1bd_ref[...], preferred_element_type=jnp.float32) + b1_ref[...]
    h = jnp.maximum(h, 0.0)                                             # [TB, A*32]
    enc = jnp.dot(h, w2bd_ref[...], preferred_element_type=jnp.float32) + b2_ref[...]
    enc = jnp.maximum(enc, 0.0)                                         # [TB, A*O]

    # --- Attention over assets (scores per asset live on the lane axis)
    scores = (jnp.dot(enc, wabd_ref[...], preferred_element_type=jnp.float32)
              + ab_ref[...])                                            # [TB, A]
    m = jnp.max(scores, axis=-1, keepdims=True)
    e = jnp.exp(scores - m)
    wsm = e / jnp.sum(e, axis=-1, keepdims=True)                        # [TB, A]

    # Expand each attention weight across its asset's O lanes (0/1 matmul, lane-dense),
    # weight the value projections; the sum over assets is folded into fc1 below.
    wsm_exp = jnp.dot(wsm, expand_ref[...], preferred_element_type=jnp.float32)  # [TB, A*O]
    vals = jnp.dot(enc, wvbd_ref[...], preferred_element_type=jnp.float32) + bv_ref[...]
    weighted = wsm_exp * vals                                           # [TB, A*O]

    # --- fc1 via row-split (replaces the [enc | ctx | extra] concat):
    #     enc @ W_enc  +  (wsm_exp*vals) @ W_ctx_stacked (== ctx @ W_ctx)  +  state @ W_extra
    h1 = (jnp.dot(enc, w1e_ref[...], preferred_element_type=jnp.float32)
          + jnp.dot(weighted, w1c_ref[...], preferred_element_type=jnp.float32)
          + jnp.dot(st, w1s_ref[...], preferred_element_type=jnp.float32)
          + fb1_ref[...])
    h1 = jnp.maximum(_layernorm(h1, g1_ref[...], be1_ref[...]), 0.0)

    h2 = jnp.dot(h1, w2_ref[...], preferred_element_type=jnp.float32) + fb2_ref[...]
    h2 = jnp.maximum(_layernorm(h2, g2_ref[...], be2_ref[...]), 0.0)

    out_ref[...] = jnp.dot(h2, w3_ref[...], preferred_element_type=jnp.float32) + fb3_ref[...]


_WEIGHT_ORDER = ('w1bd', 'b1t', 'w2bd', 'b2t',
                 'wabd', 'ab', 'wvbd', 'bvt', 'expand',
                 'w1_enc', 'w1_ctx_st', 'w1_state', 'fc1_b',
                 'ln1_g', 'ln1_b',
                 'fc2_w', 'fc2_b', 'ln2_g', 'ln2_b',
                 'fc3_wp', 'fc3_bp')


# ----------------------------------------------------------------------------
# One-time host-side weight prep: block-diag encoder/attention, fc1 row split,
# lane-padded fc3
# ----------------------------------------------------------------------------
def prepare_fused_params(p, A, F, O, E):
    fc1 = p['fc1_w'].shape[1]
    A_out = p['fc3_w'].shape[1]
    out_pad = ((A_out + 127) // 128) * 128
    eyeA = jnp.eye(A, dtype=jnp.float32)
    fp = {}

    # encoder: x[:, :A*F] @ block_diag(enc_w1) -- padded with E zero rows so the kernel
    # feeds the full state row (handles E == 0 uniformly, no in-kernel slicing).
    w1bd = jnp.kron(eyeA, p['enc_w1'])                                   # [A*F, A*32]
    fp['w1bd'] = jnp.concatenate(
        [w1bd, jnp.zeros((E, w1bd.shape[1]), jnp.float32)], axis=0)      # [S, A*32]
    fp['b1t'] = jnp.tile(p['enc_b1'], (1, A))                            # [1, A*32]
    fp['w2bd'] = jnp.kron(eyeA, p['enc_w2'])                             # [A*32, A*O]
    fp['b2t'] = jnp.tile(p['enc_b2'], (1, A))                            # [1, A*O]

    # attention / value heads, one block per asset
    fp['wabd'] = jnp.kron(eyeA, p['att_w'])                              # [A*O, A]
    fp['ab'] = p['att_b']                                                # [1, 1]
    fp['wvbd'] = jnp.kron(eyeA, p['val_w'])                              # [A*O, A*O]
    fp['bvt'] = jnp.tile(p['val_b'], (1, A))                             # [1, A*O]
    fp['expand'] = jnp.kron(eyeA, jnp.ones((1, O), jnp.float32))         # [A, A*O]

    # fc1 row split -- fc1_w rows are ordered [enc_0 | ctx, enc_1 | ctx, ..., extra]
    f1 = p['fc1_w']                                                      # [A*2*O + E, fc1]
    f1_assets = f1[:A * 2 * O].reshape(A, 2 * O, fc1)
    fp['w1_enc'] = f1_assets[:, :O, :].reshape(A * O, fc1)               # multiplies enc
    w1_ctx = f1_assets[:, O:, :].sum(axis=0)                             # [O, fc1]
    fp['w1_ctx_st'] = jnp.tile(w1_ctx, (A, 1))                           # [A*O, fc1]
    fp['w1_state'] = jnp.concatenate(
        [jnp.zeros((A * F, fc1), jnp.float32), f1[A * 2 * O:]], axis=0)  # [S, fc1]

    for k in ('fc1_b', 'ln1_g', 'ln1_b', 'fc2_w', 'fc2_b', 'ln2_g', 'ln2_b'):
        fp[k] = p[k]

    # fc3 lane-padded to a multiple of 128 -> unmasked, lane-dense output stores.
    fp['fc3_wp'] = jnp.concatenate(
        [p['fc3_w'], jnp.zeros((p['fc3_w'].shape[0], out_pad - A_out), jnp.float32)],
        axis=1)                                                          # [fc2, 128k]
    fp['fc3_bp'] = jnp.concatenate(
        [p['fc3_b'], jnp.zeros((1, out_pad - A_out), jnp.float32)], axis=1)
    return fp


# ----------------------------------------------------------------------------
# Fused forward: single pallas_call, batch-tiled grid
# ----------------------------------------------------------------------------
def fused_forward(state, fp, *, action_size, tb=1024):
    B, S = state.shape
    TB = min(B, tb)
    nt = pl.cdiv(B, TB)
    Bp = nt * TB
    x = state if Bp == B else jnp.concatenate(
        [state, jnp.zeros((Bp - B, S), state.dtype)], axis=0)

    weights = [fp[k] for k in _WEIGHT_ORDER]

    def wspec(arr):
        nd = arr.ndim
        return pl.BlockSpec(arr.shape, lambda i, _nd=nd: (0,) * _nd)

    out_pad = fp['fc3_bp'].shape[1]
    out = pl.pallas_call(
        _fused_kernel,
        grid=(nt,),
        in_specs=[pl.BlockSpec((TB, S), lambda i: (i, 0))] + [wspec(w) for w in weights],
        out_specs=pl.BlockSpec((TB, out_pad), lambda i: (i, 0)),
        out_shape=jax.ShapeDtypeStruct((Bp, out_pad), jnp.float32),
        compiler_params=pltpu.CompilerParams(dimension_semantics=("parallel",)),
    )(x, *weights)
    return out[:B, :action_size]


def enhanced_portfolio_actor_forward(params, state, *, action_size, features_per_asset,
                                     encoding_size=32, tb=1024):
    A, F, O = action_size, features_per_asset, encoding_size
    E = state.shape[1] - A * F
    fp = prepare_fused_params(params, A, F, O, E)   # constant-folded under jit
    return fused_forward(state, fp, action_size=A, tb=tb)


# ----------------------------------------------------------------------------
# Deterministic parameter init (mirrors the PyTorch init ranges)
# ----------------------------------------------------------------------------
def init_params(key, state_size, action_size, features_per_asset,
                fc1_units=256, fc2_units=128, encoding_size=32):
    A, F, O = action_size, features_per_asset, encoding_size
    E = state_size - A * F
    D = A * 2 * O + E  # head input size after attention + extra features

    keys = jax.random.split(key, 7)

    def u(k, shape, lim):
        return jax.random.uniform(k, shape, jnp.float32, -lim, lim)

    p = {}
    p['enc_w1'] = u(keys[0], (F, 32), 1.0 / math.sqrt(F))
    p['enc_b1'] = jnp.zeros((1, 32), jnp.float32)
    p['enc_w2'] = u(keys[1], (32, O), 1.0 / math.sqrt(32))
    p['enc_b2'] = jnp.zeros((1, O), jnp.float32)
    lim_att = 1.0 / math.sqrt(O)
    p['att_w'] = u(keys[2], (O, 1), lim_att)
    p['att_b'] = jnp.zeros((1, 1), jnp.float32)
    p['val_w'] = u(keys[3], (O, O), lim_att)
    p['val_b'] = jnp.zeros((1, O), jnp.float32)
    p['fc1_w'] = u(keys[4], (D, fc1_units), 1.0 / math.sqrt(D))
    p['fc1_b'] = jnp.zeros((1, fc1_units), jnp.float32)
    p['ln1_g'] = jnp.ones((1, fc1_units), jnp.float32)
    p['ln1_b'] = jnp.zeros((1, fc1_units), jnp.float32)
    p['fc2_w'] = u(keys[5], (fc1_units, fc2_units), 1.0 / math.sqrt(fc1_units))
    p['fc2_b'] = jnp.zeros((1, fc2_units), jnp.float32)
    p['ln2_g'] = jnp.ones((1, fc2_units), jnp.float32)
    p['ln2_b'] = jnp.zeros((1, fc2_units), jnp.float32)
    p['fc3_w'] = u(keys[6], (fc2_units, A), 3e-4)
    p['fc3_b'] = jnp.zeros((1, A), jnp.float32)
    return p


# ----------------------------------------------------------------------------
# Pure-JAX reference (same math, un-fused) for a correctness check
# ----------------------------------------------------------------------------
def reference_forward(p, state, A, F):
    B = state.shape[0]
    AF = A * F
    asset = state[:, :AF].reshape(B, A, F)
    extra = state[:, AF:]
    h = jax.nn.relu(asset @ p['enc_w1'] + p['enc_b1'])
    enc = jax.nn.relu(h @ p['enc_w2'] + p['enc_b2'])
    scores = (enc @ p['att_w'] + p['att_b'])[..., 0]
    w = jax.nn.softmax(scores, axis=1)[..., None]
    vals = enc @ p['val_w'] + p['val_b']
    ctx = jnp.sum(w * vals, axis=1, keepdims=True)
    enhanced = jnp.concatenate([enc, jnp.broadcast_to(ctx, enc.shape)], axis=-1)
    feat = jnp.concatenate([enhanced.reshape(B, -1), extra], axis=1)

    def ln(v, g, b):
        mu = v.mean(-1, keepdims=True)
        var = ((v - mu) ** 2).mean(-1, keepdims=True)
        return (v - mu) / jnp.sqrt(var + 1e-5) * g + b

    h1 = jax.nn.relu(ln(feat @ p['fc1_w'] + p['fc1_b'], p['ln1_g'], p['ln1_b']))
    h2 = jax.nn.relu(ln(h1 @ p['fc2_w'] + p['fc2_b'], p['ln2_g'], p['ln2_b']))
    return h2 @ p['fc3_w'] + p['fc3_b']


if __name__ == "__main__":
    # Small shapes consistent with the module: batch=2, assets(action_size)=4,
    # features_per_asset=8, extra market features=6 -> state_size=38, encoding_size=32,
    # fc1_units=256, fc2_units=128 (module defaults).
    B, A, F, E = 2, 4, 8, 6
    state_size = A * F + E

    key = jax.random.PRNGKey(0)
    pkey, skey = jax.random.split(key)
    params = init_params(pkey, state_size, A, F, fc1_units=256, fc2_units=128,
                         encoding_size=32)
    state = jax.random.normal(skey, (B, state_size), jnp.float32)

    fwd = jax.jit(enhanced_portfolio_actor_forward,
                  static_argnames=('action_size', 'features_per_asset',
                                   'encoding_size', 'tb'))

    out = jax.block_until_ready(fwd(params, state, action_size=A, features_per_asset=F))
    assert out.shape == (B, A)
    ref = reference_forward(params, state, A, F)
    np.testing.assert_allclose(np.asarray(out), np.asarray(ref), atol=1e-5, rtol=1e-5)

    # Exercise the multi-step batch-tiled grid + padding path as well.
    B2 = 13
    state2 = jax.random.normal(jax.random.PRNGKey(1), (B2, state_size), jnp.float32)
    out2 = jax.block_until_ready(
        fwd(params, state2, action_size=A, features_per_asset=F, tb=8))
    ref2 = reference_forward(params, state2, A, F)
    np.testing.assert_allclose(np.asarray(out2), np.asarray(ref2), atol=1e-5, rtol=1e-5)

    # TODO(synk): PyTorch-side dynamic layer (re)initialization / shape-recovery /
    # debug-print branches are host-side control flow and are fixed at trace time here.
    print("KERNEL_OK")
</pallas_src>

<mosaic_0001>
module attributes {stable_mosaic.version = 11 : i64} {
  func.func @_fused_kernel(%arg0: i32, %arg1: memref<2x38xf32, #tpu.memory_space<vmem>>, %arg2: memref<38x128xf32, #tpu.memory_space<vmem>>, %arg3: memref<1x128xf32, #tpu.memory_space<vmem>>, %arg4: memref<128x128xf32, #tpu.memory_space<vmem>>, %arg5: memref<1x128xf32, #tpu.memory_space<vmem>>, %arg6: memref<128x4xf32, #tpu.memory_space<vmem>>, %arg7: memref<1x1xf32, #tpu.memory_space<vmem>>, %arg8: memref<128x128xf32, #tpu.memory_space<vmem>>, %arg9: memref<1x128xf32, #tpu.memory_space<vmem>>, %arg10: memref<4x128xf32, #tpu.memory_space<vmem>>, %arg11: memref<128x256xf32, #tpu.memory_space<vmem>>, %arg12: memref<128x256xf32, #tpu.memory_space<vmem>>, %arg13: memref<38x256xf32, #tpu.memory_space<vmem>>, %arg14: memref<1x256xf32, #tpu.memory_space<vmem>>, %arg15: memref<1x256xf32, #tpu.memory_space<vmem>>, %arg16: memref<1x256xf32, #tpu.memory_space<vmem>>, %arg17: memref<256x128xf32, #tpu.memory_space<vmem>>, %arg18: memref<1x128xf32, #tpu.memory_space<vmem>>, %arg19: memref<1x128xf32, #tpu.memory_space<vmem>>, %arg20: memref<1x128xf32, #tpu.memory_space<vmem>>, %arg21: memref<128x128xf32, #tpu.memory_space<vmem>>, %arg22: memref<1x128xf32, #tpu.memory_space<vmem>>, %arg23: memref<2x128xf32, #tpu.memory_space<vmem>>) attributes {dimension_semantics = [#tpu.dimension_semantics<parallel>], iteration_bounds = array<i64: 1>, scalar_prefetch = 0 : i64, scratch_operands = 0 : i64, tpu.core_type = #tpu.core_type<tc>, window_params = [{transform_indices = @transform_0, window_bounds = array<i64: 2, 38>}, {pipeline_mode = #tpu.pipeline_mode<synchronous>, transform_indices = @transform_1, window_bounds = array<i64: 38, 128>}, {pipeline_mode = #tpu.pipeline_mode<synchronous>, transform_indices = @transform_2, window_bounds = array<i64: 1, 128>}, {pipeline_mode = #tpu.pipeline_mode<synchronous>, transform_indices = @transform_3, window_bounds = array<i64: 128, 128>}, {pipeline_mode = #tpu.pipeline_mode<synchronous>, transform_indices = @transform_4, window_bounds = array<i64: 1, 128>}, {pipeline_mode = #tpu.pipeline_mode<synchronous>, transform_indices = @transform_5, window_bounds = array<i64: 128, 4>}, {pipeline_mode = #tpu.pipeline_mode<synchronous>, transform_indices = @transform_6, window_bounds = array<i64: 1, 1>}, {pipeline_mode = #tpu.pipeline_mode<synchronous>, transform_indices = @transform_7, window_bounds = array<i64: 128, 128>}, {pipeline_mode = #tpu.pipeline_mode<synchronous>, transform_indices = @transform_8, window_bounds = array<i64: 1, 128>}, {pipeline_mode = #tpu.pipeline_mode<synchronous>, transform_indices = @transform_9, window_bounds = array<i64: 4, 128>}, {pipeline_mode = #tpu.pipeline_mode<synchronous>, transform_indices = @transform_10, window_bounds = array<i64: 128, 256>}, {pipeline_mode = #tpu.pipeline_mode<synchronous>, transform_indices = @transform_11, window_bounds = array<i64: 128, 256>}, {pipeline_mode = #tpu.pipeline_mode<synchronous>, transform_indices = @transform_12, window_bounds = array<i64: 38, 256>}, {pipeline_mode = #tpu.pipeline_mode<synchronous>, transform_indices = @transform_13, window_bounds = array<i64: 1, 256>}, {pipeline_mode = #tpu.pipeline_mode<synchronous>, transform_indices = @transform_14, window_bounds = array<i64: 1, 256>}, {pipeline_mode = #tpu.pipeline_mode<synchronous>, transform_indices = @transform_15, window_bounds = array<i64: 1, 256>}, {pipeline_mode = #tpu.pipeline_mode<synchronous>, transform_indices = @transform_16, window_bounds = array<i64: 256, 128>}, {pipeline_mode = #tpu.pipeline_mode<synchronous>, transform_indices = @transform_17, window_bounds = array<i64: 1, 128>}, {pipeline_mode = #tpu.pipeline_mode<synchronous>, transform_indices = @transform_18, window_bounds = array<i64: 1, 128>}, {pipeline_mode = #tpu.pipeline_mode<synchronous>, transform_indices = @transform_19, window_bounds = array<i64: 1, 128>}, {pipeline_mode = #tpu.pipeline_mode<synchronous>, transform_indices = @transform_20, window_bounds = array<i64: 128, 128>}, {pipeline_mode = #tpu.pipeline_mode<synchronous>, transform_indices = @transform_21, window_bounds = array<i64: 1, 128>}, {transform_indices = @transform_22, window_bounds = array<i64: 2, 128>}]} {
    %c0 = arith.constant 0 : index
    %c0_0 = arith.constant 0 : index
    %0 = vector.load %arg1[%c0, %c0_0] : memref<2x38xf32, #tpu.memory_space<vmem>>, vector<2x38xf32>
    %c0_1 = arith.constant 0 : index
    %c0_2 = arith.constant 0 : index
    %1 = vector.load %arg2[%c0_1, %c0_2] : memref<38x128xf32, #tpu.memory_space<vmem>>, vector<38x128xf32>
    %cst = arith.constant dense<0.000000e+00> : vector<2x128xf32>
    %2 = tpu.matmul %0, %1, %cst {dimension_numbers = #tpu.dot_dimension_numbers<[1], [0], [0], [1], [0, 0, 1, 1], [], []>} : vector<2x38xf32>, vector<38x128xf32>, vector<2x128xf32> -> vector<2x128xf32>
    %c0_3 = arith.constant 0 : index
    %c0_4 = arith.constant 0 : index
    %3 = vector.load %arg3[%c0_3, %c0_4] : memref<1x128xf32, #tpu.memory_space<vmem>>, vector<1x128xf32>
    %4 = vector.broadcast %3 : vector<1x128xf32> to vector<2x128xf32>
    %5 = arith.addf %2, %4 : vector<2x128xf32>
    %cst_5 = arith.constant 0.000000e+00 : f32
    %6 = vector.broadcast %cst_5 : f32 to vector<2x128xf32>
    %7 = arith.maximumf %5, %6 : vector<2x128xf32>
    %c0_6 = arith.constant 0 : index
    %c0_7 = arith.constant 0 : index
    %8 = vector.load %arg4[%c0_6, %c0_7] : memref<128x128xf32, #tpu.memory_space<vmem>>, vector<128x128xf32>
    %cst_8 = arith.constant dense<0.000000e+00> : vector<2x128xf32>
    %9 = tpu.matmul %7, %8, %cst_8 {dimension_numbers = #tpu.dot_dimension_numbers<[1], [0], [0], [1], [0, 0, 1, 1], [], []>} : vector<2x128xf32>, vector<128x128xf32>, vector<2x128xf32> -> vector<2x128xf32>
    %c0_9 = arith.constant 0 : index
    %c0_10 = arith.constant 0 : index
    %10 = vector.load %arg5[%c0_9, %c0_10] : memref<1x128xf32, #tpu.memory_space<vmem>>, vector<1x128xf32>
    %11 = vector.broadcast %10 : vector<1x128xf32> to vector<2x128xf32>
    %12 = arith.addf %9, %11 : vector<2x128xf32>
    %cst_11 = arith.constant 0.000000e+00 : f32
    %13 = vector.broadcast %cst_11 : f32 to vector<2x128xf32>
    %14 = arith.maximumf %12, %13 : vector<2x128xf32>
    %c0_12 = arith.constant 0 : index
    %c0_13 = arith.constant 0 : index
    %15 = vector.load %arg6[%c0_12, %c0_13] : memref<128x4xf32, #tpu.memory_space<vmem>>, vector<128x4xf32>
    %cst_14 = arith.constant dense<0.000000e+00> : vector<2x4xf32>
    %16 = tpu.matmul %14, %15, %cst_14 {dimension_numbers = #tpu.dot_dimension_numbers<[1], [0], [0], [1], [0, 0, 1, 1], [], []>} : vector<2x128xf32>, vector<128x4xf32>, vector<2x4xf32> -> vector<2x4xf32>
    %c0_15 = arith.constant 0 : index
    %c0_16 = arith.constant 0 : index
    %17 = vector.load %arg7[%c0_15, %c0_16] : memref<1x1xf32, #tpu.memory_space<vmem>>, vector<1x1xf32>
    %18 = vector.broadcast %17 : vector<1x1xf32> to vector<2x4xf32>
    %19 = arith.addf %16, %18 : vector<2x4xf32>
    %cst_17 = arith.constant dense<0xFF800000> : vector<2xf32>
    %20 = vector.multi_reduction <maximumf>, %19, %cst_17 [1] : vector<2x4xf32> to vector<2xf32>
    %21 = vector.shape_cast %20 : vector<2xf32> to vector<2x1xf32>
    %22 = vector.broadcast %21 : vector<2x1xf32> to vector<2x4xf32>
    %23 = arith.subf %19, %22 : vector<2x4xf32>
    %24 = math.exp %23 : vector<2x4xf32>
    %cst_18 = arith.constant dense<0.000000e+00> : vector<2xf32>
    %25 = vector.multi_reduction <add>, %24, %cst_18 [1] : vector<2x4xf32> to vector<2xf32>
    %26 = vector.shape_cast %25 : vector<2xf32> to vector<2x1xf32>
    %27 = vector.broadcast %26 : vector<2x1xf32> to vector<2x4xf32>
    %28 = arith.divf %24, %27 : vector<2x4xf32>
    %c0_19 = arith.constant 0 : index
    %c0_20 = arith.constant 0 : index
    %29 = vector.load %arg10[%c0_19, %c0_20] : memref<4x128xf32, #tpu.memory_space<vmem>>, vector<4x128xf32>
    %cst_21 = arith.constant dense<0.000000e+00> : vector<2x128xf32>
    %30 = tpu.matmul %28, %29, %cst_21 {dimension_numbers = #tpu.dot_dimension_numbers<[1], [0], [0], [1], [0, 0, 1, 1], [], []>} : vector<2x4xf32>, vector<4x128xf32>, vector<2x128xf32> -> vector<2x128xf32>
    %c0_22 = arith.constant 0 : index
    %c0_23 = arith.constant 0 : index
    %31 = vector.load %arg8[%c0_22, %c0_23] : memref<128x128xf32, #tpu.memory_space<vmem>>, vector<128x128xf32>
    %cst_24 = arith.constant dense<0.000000e+00> : vector<2x128xf32>
    %32 = tpu.matmul %14, %31, %cst_24 {dimension_numbers = #tpu.dot_dimension_numbers<[1], [0], [0], [1], [0, 0, 1, 1], [], []>} : vector<2x128xf32>, vector<128x128xf32>, vector<2x128xf32> -> vector<2x128xf32>
    %c0_25 = arith.constant 0 : index
    %c0_26 = arith.constant 0 : index
    %33 = vector.load %arg9[%c0_25, %c0_26] : memref<1x128xf32, #tpu.memory_space<vmem>>, vector<1x128xf32>
    %34 = vector.broadcast %33 : vector<1x128xf32> to vector<2x128xf32>
    %35 = arith.addf %32, %34 : vector<2x128xf32>
    %36 = arith.mulf %30, %35 : vector<2x128xf32>
    %c0_27 = arith.constant 0 : index
    %c0_28 = arith.constant 0 : index
    %37 = vector.load %arg11[%c0_27, %c0_28] : memref<128x256xf32, #tpu.memory_space<vmem>>, vector<128x256xf32>
    %cst_29 = arith.constant dense<0.000000e+00> : vector<2x256xf32>
    %38 = tpu.matmul %14, %37, %cst_29 {dimension_numbers = #tpu.dot_dimension_numbers<[1], [0], [0], [1], [0, 0, 1, 1], [], []>} : vector<2x128xf32>, vector<128x256xf32>, vector<2x256xf32> -> vector<2x256xf32>
    %c0_30 = arith.constant 0 : index
    %c0_31 = arith.constant 0 : index
    %39 = vector.load %arg12[%c0_30, %c0_31] : memref<128x256xf32, #tpu.memory_space<vmem>>, vector<128x256xf32>
    %cst_32 = arith.constant dense<0.000000e+00> : vector<2x256xf32>
    %40 = tpu.matmul %36, %39, %cst_32 {dimension_numbers = #tpu.dot_dimension_numbers<[1], [0], [0], [1], [0, 0, 1, 1], [], []>} : vector<2x128xf32>, vector<128x256xf32>, vector<2x256xf32> -> vector<2x256xf32>
    %41 = arith.addf %38, %40 : vector<2x256xf32>
    %c0_33 = arith.constant 0 : index
    %c0_34 = arith.constant 0 : index
    %42 = vector.load %arg13[%c0_33, %c0_34] : memref<38x256xf32, #tpu.memory_space<vmem>>, vector<38x256xf32>
    %cst_35 = arith.constant dense<0.000000e+00> : vector<2x256xf32>
    %43 = tpu.matmul %0, %42, %cst_35 {dimension_numbers = #tpu.dot_dimension_numbers<[1], [0], [0], [1], [0, 0, 1, 1], [], []>} : vector<2x38xf32>, vector<38x256xf32>, vector<2x256xf32> -> vector<2x256xf32>
    %44 = arith.addf %41, %43 : vector<2x256xf32>
    %c0_36 = arith.constant 0 : index
    %c0_37 = arith.constant 0 : index
    %45 = vector.load %arg14[%c0_36, %c0_37] : memref<1x256xf32, #tpu.memory_space<vmem>>, vector<1x256xf32>
    %46 = vector.broadcast %45 : vector<1x256xf32> to vector<2x256xf32>
    %47 = arith.addf %44, %46 : vector<2x256xf32>
    %c0_38 = arith.constant 0 : index
    %c0_39 = arith.constant 0 : index
    %48 = vector.load %arg15[%c0_38, %c0_39] : memref<1x256xf32, #tpu.memory_space<vmem>>, vector<1x256xf32>
    %c0_40 = arith.constant 0 : index
    %c0_41 = arith.constant 0 : index
    %49 = vector.load %arg16[%c0_40, %c0_41] : memref<1x256xf32, #tpu.memory_space<vmem>>, vector<1x256xf32>
    %cst_42 = arith.constant dense<0.000000e+00> : vector<2xf32>
    %50 = vector.multi_reduction <add>, %47, %cst_42 [1] : vector<2x256xf32> to vector<2xf32>
    %51 = vector.shape_cast %50 : vector<2xf32> to vector<2x1xf32>
    %cst_43 = arith.constant 2.560000e+02 : f32
    %52 = vector.broadcast %cst_43 : f32 to vector<2x1xf32>
    %53 = arith.divf %51, %52 : vector<2x1xf32>
    %54 = vector.broadcast %53 : vector<2x1xf32> to vector<2x256xf32>
    %55 = arith.subf %47, %54 : vector<2x256xf32>
    %56 = arith.mulf %55, %55 : vector<2x256xf32>
    %cst_44 = arith.constant dense<0.000000e+00> : vector<2xf32>
    %57 = vector.multi_reduction <add>, %56, %cst_44 [1] : vector<2x256xf32> to vector<2xf32>
    %58 = vector.shape_cast %57 : vector<2xf32> to vector<2x1xf32>
    %cst_45 = arith.constant 2.560000e+02 : f32
    %59 = vector.broadcast %cst_45 : f32 to vector<2x1xf32>
    %60 = arith.divf %58, %59 : vector<2x1xf32>
    %61 = vector.broadcast %53 : vector<2x1xf32> to vector<2x256xf32>
    %62 = arith.subf %47, %61 : vector<2x256xf32>
    %cst_46 = arith.constant 9.99999974E-6 : f32
    %63 = vector.broadcast %cst_46 : f32 to vector<2x1xf32>
    %64 = arith.addf %60, %63 : vector<2x1xf32>
    %65 = math.rsqrt %64 : vector<2x1xf32>
    %66 = vector.broadcast %65 : vector<2x1xf32> to vector<2x256xf32>
    %67 = arith.mulf %62, %66 : vector<2x256xf32>
    %68 = vector.broadcast %48 : vector<1x256xf32> to vector<2x256xf32>
    %69 = arith.mulf %67, %68 : vector<2x256xf32>
    %70 = vector.broadcast %49 : vector<1x256xf32> to vector<2x256xf32>
    %71 = arith.addf %69, %70 : vector<2x256xf32>
    %cst_47 = arith.constant 0.000000e+00 : f32
    %72 = vector.broadcast %cst_47 : f32 to vector<2x256xf32>
    %73 = arith.maximumf %71, %72 : vector<2x256xf32>
    %c0_48 = arith.constant 0 : index
    %c0_49 = arith.constant 0 : index
    %74 = vector.load %arg17[%c0_48, %c0_49] : memref<256x128xf32, #tpu.memory_space<vmem>>, vector<256x128xf32>
    %cst_50 = arith.constant dense<0.000000e+00> : vector<2x128xf32>
    %75 = tpu.matmul %73, %74, %cst_50 {dimension_numbers = #tpu.dot_dimension_numbers<[1], [0], [0], [1], [0, 0, 1, 1], [], []>} : vector<2x256xf32>, vector<256x128xf32>, vector<2x128xf32> -> vector<2x128xf32>
    %c0_51 = arith.constant 0 : index
    %c0_52 = arith.constant 0 : index
    %76 = vector.load %arg18[%c0_51, %c0_52] : memref<1x128xf32, #tpu.memory_space<vmem>>, vector<1x128xf32>
    %77 = vector.broadcast %76 : vector<1x128xf32> to vector<2x128xf32>
    %78 = arith.addf %75, %77 : vector<2x128xf32>
    %c0_53 = arith.constant 0 : index
    %c0_54 = arith.constant 0 : index
    %79 = vector.load %arg19[%c0_53, %c0_54] : memref<1x128xf32, #tpu.memory_space<vmem>>, vector<1x128xf32>
    %c0_55 = arith.constant 0 : index
    %c0_56 = arith.constant 0 : index
    %80 = vector.load %arg20[%c0_55, %c0_56] : memref<1x128xf32, #tpu.memory_space<vmem>>, vector<1x128xf32>
    %cst_57 = arith.constant dense<0.000000e+00> : vector<2xf32>
    %81 = vector.multi_reduction <add>, %78, %cst_57 [1] : vector<2x128xf32> to vector<2xf32>
    %82 = vector.shape_cast %81 : vector<2xf32> to vector<2x1xf32>
    %cst_58 = arith.constant 1.280000e+02 : f32
    %83 = vector.broadcast %cst_58 : f32 to vector<2x1xf32>
    %84 = arith.divf %82, %83 : vector<2x1xf32>
    %85 = vector.broadcast %84 : vector<2x1xf32> to vector<2x128xf32>
    %86 = arith.subf %78, %85 : vector<2x128xf32>
    %87 = arith.mulf %86, %86 : vector<2x128xf32>
    %cst_59 = arith.constant dense<0.000000e+00> : vector<2xf32>
    %88 = vector.multi_reduction <add>, %87, %cst_59 [1] : vector<2x128xf32> to vector<2xf32>
    %89 = vector.shape_cast %88 : vector<2xf32> to vector<2x1xf32>
    %cst_60 = arith.constant 1.280000e+02 : f32
    %90 = vector.broadcast %cst_60 : f32 to vector<2x1xf32>
    %91 = arith.divf %89, %90 : vector<2x1xf32>
    %92 = vector.broadcast %84 : vector<2x1xf32> to vector<2x128xf32>
    %93 = arith.subf %78, %92 : vector<2x128xf32>
    %cst_61 = arith.constant 9.99999974E-6 : f32
    %94 = vector.broadcast %cst_61 : f32 to vector<2x1xf32>
    %95 = arith.addf %91, %94 : vector<2x1xf32>
    %96 = math.rsqrt %95 : vector<2x1xf32>
    %97 = vector.broadcast %96 : vector<2x1xf32> to vector<2x128xf32>
    %98 = arith.mulf %93, %97 : vector<2x128xf32>
    %99 = vector.broadcast %79 : vector<1x128xf32> to vector<2x128xf32>
    %100 = arith.mulf %98, %99 : vector<2x128xf32>
    %101 = vector.broadcast %80 : vector<1x128xf32> to vector<2x128xf32>
    %102 = arith.addf %100, %101 : vector<2x128xf32>
    %cst_62 = arith.constant 0.000000e+00 : f32
    %103 = vector.broadcast %cst_62 : f32 to vector<2x128xf32>
    %104 = arith.maximumf %102, %103 : vector<2x128xf32>
    %c0_63 = arith.constant 0 : index
    %c0_64 = arith.constant 0 : index
    %105 = vector.load %arg21[%c0_63, %c0_64] : memref<128x128xf32, #tpu.memory_space<vmem>>, vector<128x128xf32>
    %cst_65 = arith.constant dense<0.000000e+00> : vector<2x128xf32>
    %106 = tpu.matmul %104, %105, %cst_65 {dimension_numbers = #tpu.dot_dimension_numbers<[1], [0], [0], [1], [0, 0, 1, 1], [], []>} : vector<2x128xf32>, vector<128x128xf32>, vector<2x128xf32> -> vector<2x128xf32>
    %c0_66 = arith.constant 0 : index
    %c0_67 = arith.constant 0 : index
    %107 = vector.load %arg22[%c0_66, %c0_67] : memref<1x128xf32, #tpu.memory_space<vmem>>, vector<1x128xf32>
    %108 = vector.broadcast %107 : vector<1x128xf32> to vector<2x128xf32>
    %109 = arith.addf %106, %108 : vector<2x128xf32>
    %c0_68 = arith.constant 0 : index
    %c0_69 = arith.constant 0 : index
    %110 = vector.load %arg23[%c0_68, %c0_69] : memref<2x128xf32, #tpu.memory_space<vmem>>, vector<2x128xf32>
    tpu.vector_store %arg23[%c0_68, %c0_69], %109 {strides = array<i32>} : memref<2x128xf32, #tpu.memory_space<vmem>>, vector<2x128xf32>,
    return
  }
  func.func @transform_0(%arg0: i32) -> (i32, i32) {
    %c0_i32 = arith.constant 0 : i32
    %c0_i32_0 = arith.constant 0 : i32
    return %arg0, %c0_i32 : i32, i32
  }
  func.func @transform_1(%arg0: i32) -> (i32, i32) {
    %c0_i32 = arith.constant 0 : i32
    %c0_i32_0 = arith.constant 0 : i32
    %c0_i32_1 = arith.constant 0 : i32
    return %c0_i32, %c0_i32_0 : i32, i32
  }
  func.func @transform_2(%arg0: i32) -> (i32, i32) {
    %c0_i32 = arith.constant 0 : i32
    %c0_i32_0 = arith.constant 0 : i32
    %c0_i32_1 = arith.constant 0 : i32
    return %c0_i32, %c0_i32_0 : i32, i32
  }
  func.func @transform_3(%arg0: i32) -> (i32, i32) {
    %c0_i32 = arith.constant 0 : i32
    %c0_i32_0 = arith.constant 0 : i32
    %c0_i32_1 = arith.constant 0 : i32
    return %c0_i32, %c0_i32_0 : i32, i32
  }
  func.func @transform_4(%arg0: i32) -> (i32, i32) {
    %c0_i32 = arith.constant 0 : i32
    %c0_i32_0 = arith.constant 0 : i32
    %c0_i32_1 = arith.constant 0 : i32
    return %c0_i32, %c0_i32_0 : i32, i32
  }
  func.func @transform_5(%arg0: i32) -> (i32, i32) {
    %c0_i32 = arith.constant 0 : i32
    %c0_i32_0 = arith.constant 0 : i32
    %c0_i32_1 = arith.constant 0 : i32
    return %c0_i32, %c0_i32_0 : i32, i32
  }
  func.func @transform_6(%arg0: i32) -> (i32, i32) {
    %c0_i32 = arith.constant 0 : i32
    %c0_i32_0 = arith.constant 0 : i32
    %c0_i32_1 = arith.constant 0 : i32
    return %c0_i32, %c0_i32_0 : i32, i32
  }
  func.func @transform_7(%arg0: i32) -> (i32, i32) {
    %c0_i32 = arith.constant 0 : i32
    %c0_i32_0 = arith.constant 0 : i32
    %c0_i32_1 = arith.constant 0 : i32
    return %c0_i32, %c0_i32_0 : i32, i32
  }
  func.func @transform_8(%arg0: i32) -> (i32, i32) {
    %c0_i32 = arith.constant 0 : i32
    %c0_i32_0 = arith.constant 0 : i32
    %c0_i32_1 = arith.constant 0 : i32
    return %c0_i32, %c0_i32_0 : i32, i32
  }
  func.func @transform_9(%arg0: i32) -> (i32, i32) {
    %c0_i32 = arith.constant 0 : i32
    %c0_i32_0 = arith.constant 0 : i32
    %c0_i32_1 = arith.constant 0 : i32
    return %c0_i32, %c0_i32_0 : i32, i32
  }
  func.func @transform_10(%arg0: i32) -> (i32, i32) {
    %c0_i32 = arith.constant 0 : i32
    %c0_i32_0 = arith.constant 0 : i32
    %c0_i32_1 = arith.constant 0 : i32
    return %c0_i32, %c0_i32_0 : i32, i32
  }
  func.func @transform_11(%arg0: i32) -> (i32, i32) {
    %c0_i32 = arith.constant 0 : i32
    %c0_i32_0 = arith.constant 0 : i32
    %c0_i32_1 = arith.constant 0 : i32
    return %c0_i32, %c0_i32_0 : i32, i32
  }
  func.func @transform_12(%arg0: i32) -> (i32, i32) {
    %c0_i32 = arith.constant 0 : i32
    %c0_i32_0 = arith.constant 0 : i32
    %c0_i32_1 = arith.constant 0 : i32
    return %c0_i32, %c0_i32_0 : i32, i32
  }
  func.func @transform_13(%arg0: i32) -> (i32, i32) {
    %c0_i32 = arith.constant 0 : i32
    %c0_i32_0 = arith.constant 0 : i32
    %c0_i32_1 = arith.constant 0 : i32
    return %c0_i32, %c0_i32_0 : i32, i32
  }
  func.func @transform_14(%arg0: i32) -> (i32, i32) {
    %c0_i32 = arith.constant 0 : i32
    %c0_i32_0 = arith.constant 0 : i32
    %c0_i32_1 = arith.constant 0 : i32
    return %c0_i32, %c0_i32_0 : i32, i32
  }
  func.func @transform_15(%arg0: i32) -> (i32, i32) {
    %c0_i32 = arith.constant 0 : i32
    %c0_i32_0 = arith.constant 0 : i32
    %c0_i32_1 = arith.constant 0 : i32
    return %c0_i32, %c0_i32_0 : i32, i32
  }
  func.func @transform_16(%arg0: i32) -> (i32, i32) {
    %c0_i32 = arith.constant 0 : i32
    %c0_i32_0 = arith.constant 0 : i32
    %c0_i32_1 = arith.constant 0 : i32
    return %c0_i32, %c0_i32_0 : i32, i32
  }
  func.func @transform_17(%arg0: i32) -> (i32, i32) {
    %c0_i32 = arith.constant 0 : i32
    %c0_i32_0 = arith.constant 0 : i32
    %c0_i32_1 = arith.constant 0 : i32
    return %c0_i32, %c0_i32_0 : i32, i32
  }
  func.func @transform_18(%arg0: i32) -> (i32, i32) {
    %c0_i32 = arith.constant 0 : i32
    %c0_i32_0 = arith.constant 0 : i32
    %c0_i32_1 = arith.constant 0 : i32
    return %c0_i32, %c0_i32_0 : i32, i32
  }
  func.func @transform_19(%arg0: i32) -> (i32, i32) {
    %c0_i32 = arith.constant 0 : i32
    %c0_i32_0 = arith.constant 0 : i32
    %c0_i32_1 = arith.constant 0 : i32
    return %c0_i32, %c0_i32_0 : i32, i32
  }
  func.func @transform_20(%arg0: i32) -> (i32, i32) {
    %c0_i32 = arith.constant 0 : i32
    %c0_i32_0 = arith.constant 0 : i32
    %c0_i32_1 = arith.constant 0 : i32
    return %c0_i32, %c0_i32_0 : i32, i32
  }
  func.func @transform_21(%arg0: i32) -> (i32, i32) {
    %c0_i32 = arith.constant 0 : i32
    %c0_i32_0 = arith.constant 0 : i32
    %c0_i32_1 = arith.constant 0 : i32
    return %c0_i32, %c0_i32_0 : i32, i32
  }
  func.func @transform_22(%arg0: i32) -> (i32, i32) {
    %c0_i32 = arith.constant 0 : i32
    %c0_i32_0 = arith.constant 0 : i32
    return %arg0, %c0_i32 : i32, i32
  }
}

</mosaic_0001>

<llo_original>
// kernel: enhanced_portfolio_actor_forward.1
$region0: #{enhanced_portfolio_actor_forward.1}
  #allocation0 [shape = 'u32[]', space=smem, size = 0x4, offset = 0x4, fixed_abs, tag = 'smem constant byte address 0x4 - core index']
  #allocation1 [shape = 'u32[144,128]{1,0:T(1,128)}', space=vmem, size = 0x12000, scoped, tag = 'internal scratch']
  #allocation2 [shape = 'f32[1,1]{1,0:T(1,128)S(1)}', space=vmem, size = 0x200, scoped, tag = 'scoped memory for enhanced_portfolio_actor_forward.1']
  %s0 = inlined_call_operand.vmem [shape: f32[2,38], index: 0, kind: input, shape index: {}]
  %s1 = inlined_call_operand.vmem [shape: f32[38,128], index: 1, kind: input, shape index: {}]
  %s2 = inlined_call_operand.vmem [shape: f32[1,128], index: 2, kind: input, shape index: {}]
  %s3 = inlined_call_operand.vmem [shape: f32[128,128], index: 3, kind: input, shape index: {}]
  %s4 = inlined_call_operand.vmem [shape: f32[1,128], index: 4, kind: input, shape index: {}]
  %s5 = inlined_call_operand.vmem [shape: f32[128,4], index: 5, kind: input, shape index: {}]
  %s6 = inlined_call_operand.<no memory space> [shape: f32[1,1], index: 6, kind: input, shape index: {}]
  %s7 = inlined_call_operand.vmem [shape: f32[128,128], index: 7, kind: input, shape index: {}]
  %s8 = inlined_call_operand.vmem [shape: f32[1,128], index: 8, kind: input, shape index: {}]
  %s9 = inlined_call_operand.vmem [shape: f32[4,128], index: 9, kind: input, shape index: {}]
  %s10 = inlined_call_operand.vmem [shape: f32[128,256], index: 10, kind: input, shape index: {}]
  %s11 = inlined_call_operand.vmem [shape: f32[128,256], index: 11, kind: input, shape index: {}]
  %s12 = inlined_call_operand.vmem [shape: f32[38,256], index: 12, kind: input, shape index: {}]
  %s13 = inlined_call_operand.vmem [shape: f32[1,256], index: 13, kind: input, shape index: {}]
  %s14 = inlined_call_operand.vmem [shape: f32[1,256], index: 14, kind: input, shape index: {}]
  %s15 = inlined_call_operand.vmem [shape: f32[1,256], index: 15, kind: input, shape index: {}]
  %s16 = inlined_call_operand.vmem [shape: f32[256,128], index: 16, kind: input, shape index: {}]
  %s17 = inlined_call_operand.vmem [shape: f32[1,128], index: 17, kind: input, shape index: {}]
  %s18 = inlined_call_operand.vmem [shape: f32[1,128], index: 18, kind: input, shape index: {}]
  %s19 = inlined_call_operand.vmem [shape: f32[1,128], index: 19, kind: input, shape index: {}]
  %s20 = inlined_call_operand.vmem [shape: f32[128,128], index: 20, kind: input, shape index: {}]
  %s21 = inlined_call_operand.vmem [shape: f32[1,128], index: 21, kind: input, shape index: {}]
  %s22 = inlined_call_operand.hbm [shape: f32[2,128], index: 22, kind: output, shape index: {}]
  %s23 = sld [smem:[#allocation0]]
  $region98: #{enhanced_portfolio_actor_forward.1} parent=0
    _
  %s25 = ssub.s32 1, %s23
  %s26 = scalar_select 0, %s25, %s23
  %v27 = vstv %s6
  %28 = vst [vmem:[#allocation2] sm:$0x1] %v27
  $region1: #{enhanced_portfolio_actor_forward.1} parent=0
    #allocation3 [shape = 'u8[1024]{0}', space=vmem, size = 0x400, scoped, tag = 'output window, operand 0, single buffered']
    #allocation4 [shape = 's32[1]{0}', space=sflag, size = 0x4, scoped, tag = 'scoped memory for enhanced_portfolio_actor_forward.1']
    %29 = vsyncpa [#allocation4], 0
    // Predicated region
    $region2: #{enhanced_portfolio_actor_forward.1} parent=1 // pred_check
      _
    $region3: #{enhanced_portfolio_actor_forward.1} parent=1 // pred_check_branch
      %31 = sbr.rel (0) target = $region5
    $region4: #{enhanced_portfolio_actor_forward.1} parent=1 // pred_region
      _
    $region5: #{enhanced_portfolio_actor_forward.1} parent=1 // pred_fallthru
      _
    // Predicated region
    $region6: #{enhanced_portfolio_actor_forward.1} parent=1 // pred_check
      _
    $region7: #{enhanced_portfolio_actor_forward.1} parent=1 // pred_check_branch
      %33 = sbr.rel (0) target = $region9
    $region8: #{enhanced_portfolio_actor_forward.1} parent=1 // pred_region
      _
    $region9: #{enhanced_portfolio_actor_forward.1} parent=1 // pred_fallthru
      _
    // Predicated region
    $region10: #{enhanced_portfolio_actor_forward.1} parent=1 // pred_check
      _
    $region11: #{enhanced_portfolio_actor_forward.1} parent=1 // pred_check_branch
      %35 = sbr.rel (0) target = $region13
    $region12: #{enhanced_portfolio_actor_forward.1} parent=1 // pred_region
      _
    $region13: #{enhanced_portfolio_actor_forward.1} parent=1 // pred_fallthru
      _
    // Predicated region
    $region14: #{enhanced_portfolio_actor_forward.1} parent=1 // pred_check
      _
    $region15: #{enhanced_portfolio_actor_forward.1} parent=1 // pred_check_branch
      %37 = sbr.rel (0) target = $region17
    $region16: #{enhanced_portfolio_actor_forward.1} parent=1 // pred_region
      _
    $region17: #{enhanced_portfolio_actor_forward.1} parent=1 // pred_fallthru
      _
    // Predicated region
    $region18: #{enhanced_portfolio_actor_forward.1} parent=1 // pred_check
      _
    $region19: #{enhanced_portfolio_actor_forward.1} parent=1 // pred_check_branch
      %39 = sbr.rel (0) target = $region21
    $region20: #{enhanced_portfolio_actor_forward.1} parent=1 // pred_region
      _
    $region21: #{enhanced_portfolio_actor_forward.1} parent=1 // pred_fallthru
      _
    // Predicated region
    $region22: #{enhanced_portfolio_actor_forward.1} parent=1 // pred_check
      _
    $region23: #{enhanced_portfolio_actor_forward.1} parent=1 // pred_check_branch
      %41 = sbr.rel (0) target = $region25
    $region24: #{enhanced_portfolio_actor_forward.1} parent=1 // pred_region
      _
    $region25: #{enhanced_portfolio_actor_forward.1} parent=1 // pred_fallthru
      _
    // Predicated region
    $region26: #{enhanced_portfolio_actor_forward.1} parent=1 // pred_check
      _
    $region27: #{enhanced_portfolio_actor_forward.1} parent=1 // pred_check_branch
      %43 = sbr.rel (0) target = $region29
    $region28: #{enhanced_portfolio_actor_forward.1} parent=1 // pred_region
      _
    $region29: #{enhanced_portfolio_actor_forward.1} parent=1 // pred_fallthru
      _
    // Predicated region
    $region30: #{enhanced_portfolio_actor_forward.1} parent=1 // pred_check
      _
    $region31: #{enhanced_portfolio_actor_forward.1} parent=1 // pred_check_branch
      %45 = sbr.rel (0) target = $region33
    $region32: #{enhanced_portfolio_actor_forward.1} parent=1 // pred_region
      _
    $region33: #{enhanced_portfolio_actor_forward.1} parent=1 // pred_fallthru
      _
    // Predicated region
    $region34: #{enhanced_portfolio_actor_forward.1} parent=1 // pred_check
      _
    $region35: #{enhanced_portfolio_actor_forward.1} parent=1 // pred_check_branch
      %47 = sbr.rel (0) target = $region37
    $region36: #{enhanced_portfolio_actor_forward.1} parent=1 // pred_region
      _
    $region37: #{enhanced_portfolio_actor_forward.1} parent=1 // pred_fallthru
      _
    // Predicated region
    $region38: #{enhanced_portfolio_actor_forward.1} parent=1 // pred_check
      _
    $region39: #{enhanced_portfolio_actor_forward.1} parent=1 // pred_check_branch
      %49 = sbr.rel (0) target = $region41
    $region40: #{enhanced_portfolio_actor_forward.1} parent=1 // pred_region
      _
    $region41: #{enhanced_portfolio_actor_forward.1} parent=1 // pred_fallthru
      _
    // Predicated region
    $region42: #{enhanced_portfolio_actor_forward.1} parent=1 // pred_check
      _
    $region43: #{enhanced_portfolio_actor_forward.1} parent=1 // pred_check_branch
      %51 = sbr.rel (0) target = $region45
    $region44: #{enhanced_portfolio_actor_forward.1} parent=1 // pred_region
      _
    $region45: #{enhanced_portfolio_actor_forward.1} parent=1 // pred_fallthru
      _
    // Predicated region
    $region46: #{enhanced_portfolio_actor_forward.1} parent=1 // pred_check
      _
    $region47: #{enhanced_portfolio_actor_forward.1} parent=1 // pred_check_branch
      %53 = sbr.rel (0) target = $region49
    $region48: #{enhanced_portfolio_actor_forward.1} parent=1 // pred_region
      _
    $region49: #{enhanced_portfolio_actor_forward.1} parent=1 // pred_fallthru
      _
    // Predicated region
    $region50: #{enhanced_portfolio_actor_forward.1} parent=1 // pred_check
      _
    $region51: #{enhanced_portfolio_actor_forward.1} parent=1 // pred_check_branch
      %55 = sbr.rel (0) target = $region53
    $region52: #{enhanced_portfolio_actor_forward.1} parent=1 // pred_region
      _
    $region53: #{enhanced_portfolio_actor_forward.1} parent=1 // pred_fallthru
      _
    // Predicated region
    $region54: #{enhanced_portfolio_actor_forward.1} parent=1 // pred_check
      _
    $region55: #{enhanced_portfolio_actor_forward.1} parent=1 // pred_check_branch
      %57 = sbr.rel (0) target = $region57
    $region56: #{enhanced_portfolio_actor_forward.1} parent=1 // pred_region
      _
    $region57: #{enhanced_portfolio_actor_forward.1} parent=1 // pred_fallthru
      _
    // Predicated region
    $region58: #{enhanced_portfolio_actor_forward.1} parent=1 // pred_check
      _
    $region59: #{enhanced_portfolio_actor_forward.1} parent=1 // pred_check_branch
      %59 = sbr.rel (0) target = $region61
    $region60: #{enhanced_portfolio_actor_forward.1} parent=1 // pred_region
      _
    $region61: #{enhanced_portfolio_actor_forward.1} parent=1 // pred_fallthru
      _
    // Predicated region
    $region62: #{enhanced_portfolio_actor_forward.1} parent=1 // pred_check
      _
    $region63: #{enhanced_portfolio_actor_forward.1} parent=1 // pred_check_branch
      %61 = sbr.rel (0) target = $region65
    $region64: #{enhanced_portfolio_actor_forward.1} parent=1 // pred_region
      _
    $region65: #{enhanced_portfolio_actor_forward.1} parent=1 // pred_fallthru
      _
    // Predicated region
    $region66: #{enhanced_portfolio_actor_forward.1} parent=1 // pred_check
      _
    $region67: #{enhanced_portfolio_actor_forward.1} parent=1 // pred_check_branch
      %63 = sbr.rel (0) target = $region69
    $region68: #{enhanced_portfolio_actor_forward.1} parent=1 // pred_region
      _
    $region69: #{enhanced_portfolio_actor_forward.1} parent=1 // pred_fallthru
      _
    // Predicated region
    $region70: #{enhanced_portfolio_actor_forward.1} parent=1 // pred_check
      _
    $region71: #{enhanced_portfolio_actor_forward.1} parent=1 // pred_check_branch
      %65 = sbr.rel (0) target = $region73
    $region72: #{enhanced_portfolio_actor_forward.1} parent=1 // pred_region
      _
    $region73: #{enhanced_portfolio_actor_forward.1} parent=1 // pred_fallthru
      _
    // Predicated region
    $region74: #{enhanced_portfolio_actor_forward.1} parent=1 // pred_check
      _
    $region75: #{enhanced_portfolio_actor_forward.1} parent=1 // pred_check_branch
      %67 = sbr.rel (0) target = $region77
    $region76: #{enhanced_portfolio_actor_forward.1} parent=1 // pred_region
      _
    $region77: #{enhanced_portfolio_actor_forward.1} parent=1 // pred_fallthru
      _
    // Predicated region
    $region78: #{enhanced_portfolio_actor_forward.1} parent=1 // pred_check
      _
    $region79: #{enhanced_portfolio_actor_forward.1} parent=1 // pred_check_branch
      %69 = sbr.rel (0) target = $region81
    $region80: #{enhanced_portfolio_actor_forward.1} parent=1 // pred_region
      _
    $region81: #{enhanced_portfolio_actor_forward.1} parent=1 // pred_fallthru
      _
    // Predicated region
    $region82: #{enhanced_portfolio_actor_forward.1} parent=1 // pred_check
      _
    $region83: #{enhanced_portfolio_actor_forward.1} parent=1 // pred_check_branch
      %71 = sbr.rel (0) target = $region85
    $region84: #{enhanced_portfolio_actor_forward.1} parent=1 // pred_region
      _
    $region85: #{enhanced_portfolio_actor_forward.1} parent=1 // pred_fallthru
      _
    // Predicated region
    $region86: #{enhanced_portfolio_actor_forward.1} parent=1 // pred_check
      _
    $region87: #{enhanced_portfolio_actor_forward.1} parent=1 // pred_check_branch
      %73 = sbr.rel (0) target = $region89
    $region88: #{enhanced_portfolio_actor_forward.1} parent=1 // pred_region
      _
    $region89: #{enhanced_portfolio_actor_forward.1} parent=1 // pred_fallthru
      _
    %v74 = vld [vmem:[%s0] sm:$0x3]
    %v75 = vld [vmem:[%s1] sm:$0xff]
    %v76 = vld [vmem:[%s1 + $0x8] sm:$0xff]
    %v77 = vld [vmem:[%s1 + $0x10] sm:$0xff]
    %v78 = vld [vmem:[%s1 + $0x18] sm:$0xff]
    %v79 = vld [vmem:[%s1 + $0x20] sm:$0x3f]
    %v80 = vld [vmem:[%s2] sm:$0x1]
    %v82 = vlaneseq
    %v83 = vshrl.u32 %v82, 7
    %v84 = vsub.s32 0, %v83
    %v85 = vrot.slane %v80, %v84
    %vm87 = vcmask 310272
    %v89 = vsel %vm87, %v74, 0
    %vm91 = vcmask 1045504
    %v93 = vsel %vm91, %v79, 0
    %95 = vmatprep.subr.mxu0 0.0
    %96 = vmatpush1.msra.mxu0 0.0
    %97 = vmatprep.subr.mxu0 0.0
    %98 = vmatpush1.msra.mxu0 0.0
    %99 = vmatprep.subr.mxu0 0.0
    %100 = vmatpush1.msra.mxu0 0.0
    %101 = vmatprep.subr.mxu0 0.0
    %102 = vmatpush1.msra.mxu0 0.0
    %103 = vmatprep.subr.mxu0 0.0
    %104 = vmatpush1.msra.mxu0 0.0
    %105 = vmatprep.subr.mxu0 0.0
    %106 = vmatpush1.msra.mxu0 0.0
    %107 = vmatprep.subr.mxu0 0.0
    %108 = vmatpush1.msra.mxu0 0.0
    %109 = vmatprep.subr.mxu0 0.0
    %110 = vmatpush1.msra.mxu0 0.0
    %111 = vmatprep.subr.mxu0 0.0
    %112 = vmatpush1.msra.mxu0 0.0
    %113 = vmatprep.subr.mxu0 0.0
    %114 = vmatpush1.msra.mxu0 0.0
    %115 = vmatprep.subr.mxu0 0.0
    %116 = vmatpush1.msra.mxu0 0.0
    %117 = vmatprep.subr.mxu0 0.0
    %118 = vmatpush1.msra.mxu0 %v93
    %119 = vmatprep.subr.mxu0 0.0
    %120 = vmatpush1.msra.mxu0 %v78
    %121 = vmatprep.subr.mxu0 0.0
    %122 = vmatpush1.msra.mxu0 %v77
    %123 = vmatprep.subr.mxu0 0.0
    %124 = vmatpush1.msra.mxu0 %v76
    %125 = vmatprep.subr.mxu0 0.0
    %126 = vmatpush1.msra.mxu0 %v75
    %127 = vmatprep.subr.mxu0 0.0
    %128 = vmatpush2.msra.mxu0 0.0
    %129 = vmatprep.subr.mxu0 0.0
    %130 = vmatpush2.msra.mxu0 0.0
    %131 = vmatprep.subr.mxu0 0.0
    %132 = vmatpush2.msra.mxu0 0.0
    %133 = vmatprep.subr.mxu0 0.0
    %134 = vmatpush2.msra.mxu0 0.0
    %135 = vmatprep.subr.mxu0 0.0
    %136 = vmatpush2.msra.mxu0 0.0
    %137 = vmatprep.subr.mxu0 0.0
    %138 = vmatpush2.msra.mxu0 0.0
    %139 = vmatprep.subr.mxu0 0.0
    %140 = vmatpush2.msra.mxu0 0.0
    %141 = vmatprep.subr.mxu0 0.0
    %142 = vmatpush2.msra.mxu0 0.0
    %143 = vmatprep.subr.mxu0 0.0
    %144 = vmatpush2.msra.mxu0 0.0
    %145 = vmatprep.subr.mxu0 0.0
    %146 = vmatpush2.msra.mxu0 0.0
    %147 = vmatprep.subr.mxu0 0.0
    %148 = vmatpush2.msra.mxu0 0.0
    %149 = vmatprep.subr.mxu0 0.0
    %150 = vmatpush2.msra.mxu0 0.0
    %151 = vmatprep.subr.mxu0 0.0
    %152 = vmatpush2.msra.mxu0 0.0
    %153 = vmatprep.subr.mxu0 0.0
    %154 = vmatpush2.msra.mxu0 0.0
    %155 = vmatprep.subr.mxu0 0.0
    %156 = vmatpush2.msra.mxu0 0.0
    %157 = vmatprep.subr.mxu0 0.0
    %158 = vmatpush2.msra.mxu0 0.0
    %159 = vmatprep.mubr.f32.mxu0 0.0
    %160 = vmatmul.mubr.f32.gmra.mxu0 %v89
    %v161 = vpop.f32.mrf.mxu0
    %v162 = vadd.f32 %v85, %v161
    %v163 = vpop.f32.mrf.mxu0
    %164 = vdwg.mxu0
    %v165 = vmax.f32 %v162, 0.0
    %v166 = vld [vmem:[%s3] sm:$0xff]
    %v167 = vld [vmem:[%s3 + $0x8] sm:$0xff]
    %v168 = vld [vmem:[%s3 + $0x10] sm:$0xff]
    %v169 = vld [vmem:[%s3 + $0x18] sm:$0xff]
    %v170 = vld [vmem:[%s3 + $0x20] sm:$0xff]
    %v171 = vld [vmem:[%s3 + $0x28] sm:$0xff]
    %v172 = vld [vmem:[%s3 + $0x30] sm:$0xff]
    %v173 = vld [vmem:[%s3 + $0x38] sm:$0xff]
    %v174 = vld [vmem:[%s3 + $0x40] sm:$0xff]
    %v175 = vld [vmem:[%s3 + $0x48] sm:$0xff]
    %v176 = vld [vmem:[%s3 + $0x50] sm:$0xff]
    %v177 = vld [vmem:[%s3 + $0x58] sm:$0xff]
    %v178 = vld [vmem:[%s3 + $0x60] sm:$0xff]
    %v179 = vld [vmem:[%s3 + $0x68] sm:$0xff]
    %v180 = vld [vmem:[%s3 + $0x70] sm:$0xff]
    %v181 = vld [vmem:[%s3 + $0x78] sm:$0xff]
    %v182 = vld [vmem:[%s4] sm:$0x1]
    %v184 = vlaneseq
    %v185 = vshrl.u32 %v184, 7
    %v186 = vsub.s32 0, %v185
    %v187 = vrot.slane %v182, %v186
    %189 = vmatprep.subr.mxu0 0.0
    %190 = vmatpush1.msra.mxu0 %v181
    %191 = vmatprep.subr.mxu0 0.0
    %192 = vmatpush1.msra.mxu0 %v180
    %193 = vmatprep.subr.mxu0 0.0
    %194 = vmatpush1.msra.mxu0 %v179
    %195 = vmatprep.subr.mxu0 0.0
    %196 = vmatpush1.msra.mxu0 %v178
    %197 = vmatprep.subr.mxu0 0.0
    %198 = vmatpush1.msra.mxu0 %v177
    %199 = vmatprep.subr.mxu0 0.0
    %200 = vmatpush1.msra.mxu0 %v176
    %201 = vmatprep.subr.mxu0 0.0
    %202 = vmatpush1.msra.mxu0 %v175
    %203 = vmatprep.subr.mxu0 0.0
    %204 = vmatpush1.msra.mxu0 %v174
    %205 = vmatprep.subr.mxu0 0.0
    %206 = vmatpush1.msra.mxu0 %v173
    %207 = vmatprep.subr.mxu0 0.0
    %208 = vmatpush1.msra.mxu0 %v172
    %209 = vmatprep.subr.mxu0 0.0
    %210 = vmatpush1.msra.mxu0 %v171
    %211 = vmatprep.subr.mxu0 0.0
    %212 = vmatpush1.msra.mxu0 %v170
    %213 = vmatprep.subr.mxu0 0.0
    %214 = vmatpush1.msra.mxu0 %v169
    %215 = vmatprep.subr.mxu0 0.0
    %216 = vmatpush1.msra.mxu0 %v168
    %217 = vmatprep.subr.mxu0 0.0
    %218 = vmatpush1.msra.mxu0 %v167
    %219 = vmatprep.subr.mxu0 0.0
    %220 = vmatpush1.msra.mxu0 %v166
    %221 = vmatprep.subr.mxu0 0.0
    %222 = vmatpush2.msra.mxu0 0.0
    %223 = vmatprep.subr.mxu0 0.0
    %224 = vmatpush2.msra.mxu0 0.0
    %225 = vmatprep.subr.mxu0 0.0
    %226 = vmatpush2.msra.mxu0 0.0
    %227 = vmatprep.subr.mxu0 0.0
    %228 = vmatpush2.msra.mxu0 0.0
    %229 = vmatprep.subr.mxu0 0.0
    %230 = vmatpush2.msra.mxu0 0.0
    %231 = vmatprep.subr.mxu0 0.0
    %232 = vmatpush2.msra.mxu0 0.0
    %233 = vmatprep.subr.mxu0 0.0
    %234 = vmatpush2.msra.mxu0 0.0
    %235 = vmatprep.subr.mxu0 0.0
    %236 = vmatpush2.msra.mxu0 0.0
    %237 = vmatprep.subr.mxu0 0.0
    %238 = vmatpush2.msra.mxu0 0.0
    %239 = vmatprep.subr.mxu0 0.0
    %240 = vmatpush2.msra.mxu0 0.0
    %241 = vmatprep.subr.mxu0 0.0
    %242 = vmatpush2.msra.mxu0 0.0
    %243 = vmatprep.subr.mxu0 0.0
    %244 = vmatpush2.msra.mxu0 0.0
    %245 = vmatprep.subr.mxu0 0.0
    %246 = vmatpush2.msra.mxu0 0.0
    %247 = vmatprep.subr.mxu0 0.0
    %248 = vmatpush2.msra.mxu0 0.0
    %249 = vmatprep.subr.mxu0 0.0
    %250 = vmatpush2.msra.mxu0 0.0
    %251 = vmatprep.subr.mxu0 0.0
    %252 = vmatpush2.msra.mxu0 0.0
    %253 = vmatprep.mubr.f32.mxu0 0.0
    %254 = vmatmul.mubr.f32.gmra.mxu0 %v165
    %v255 = vpop.f32.mrf.mxu0
    %v256 = vadd.f32 %v187, %v255
    %v257 = vpop.f32.mrf.mxu0
    %258 = vdwg.mxu0
    %v259 = vmax.f32 %v256, 0.0
    %v260 = vld [vmem:[%s5] sm:$0xff]
    %v261 = vld [vmem:[%s5 + $0x8] sm:$0xff]
    %v262 = vld [vmem:[%s5 + $0x10] sm:$0xff]
    %v263 = vld [vmem:[%s5 + $0x18] sm:$0xff]
    %v264 = vld [vmem:[%s5 + $0x20] sm:$0xff]
    %v265 = vld [vmem:[%s5 + $0x28] sm:$0xff]
    %v266 = vld [vmem:[%s5 + $0x30] sm:$0xff]
    %v267 = vld [vmem:[%s5 + $0x38] sm:$0xff]
    %v268 = vld [vmem:[%s5 + $0x40] sm:$0xff]
    %v269 = vld [vmem:[%s5 + $0x48] sm:$0xff]
    %v270 = vld [vmem:[%s5 + $0x50] sm:$0xff]
    %v271 = vld [vmem:[%s5 + $0x58] sm:$0xff]
    %v272 = vld [vmem:[%s5 + $0x60] sm:$0xff]
    %v273 = vld [vmem:[%s5 + $0x68] sm:$0xff]
    %v274 = vld [vmem:[%s5 + $0x70] sm:$0xff]
    %v275 = vld [vmem:[%s5 + $0x78] sm:$0xff]
    %v276 = vld [vmem:[#allocation2] sm:$0x1]
    %v278 = vlaneseq
    %v279 = vshrl.u32 %v278, 7
    %v280 = vsub.s32 0, %v279
    %v281 = vrot.slane %v276, %v280
    %282 = vset.pattern.permute.xlu0 0
    %283 = vperm.xlu0 %282, %v281
    %v284 = vpop.permute.xlu0 %283
    %286 = vmatprep.subr.mxu0 0.0
    %287 = vmatpush1.msra.mxu0 %v275
    %288 = vmatprep.subr.mxu0 0.0
    %289 = vmatpush1.msra.mxu0 %v274
    %290 = vmatprep.subr.mxu0 0.0
    %291 = vmatpush1.msra.mxu0 %v273
    %292 = vmatprep.subr.mxu0 0.0
    %293 = vmatpush1.msra.mxu0 %v272
    %294 = vmatprep.subr.mxu0 0.0
    %295 = vmatpush1.msra.mxu0 %v271
    %296 = vmatprep.subr.mxu0 0.0
    %297 = vmatpush1.msra.mxu0 %v270
    %298 = vmatprep.subr.mxu0 0.0
    %299 = vmatpush1.msra.mxu0 %v269
    %300 = vmatprep.subr.mxu0 0.0
    %301 = vmatpush1.msra.mxu0 %v268
    %302 = vmatprep.subr.mxu0 0.0
    %303 = vmatpush1.msra.mxu0 %v267
    %304 = vmatprep.subr.mxu0 0.0
    %305 = vmatpush1.msra.mxu0 %v266
    %306 = vmatprep.subr.mxu0 0.0
    %307 = vmatpush1.msra.mxu0 %v265
    %308 = vmatprep.subr.mxu0 0.0
    %309 = vmatpush1.msra.mxu0 %v264
    %310 = vmatprep.subr.mxu0 0.0
    %311 = vmatpush1.msra.mxu0 %v263
    %312 = vmatprep.subr.mxu0 0.0
    %313 = vmatpush1.msra.mxu0 %v262
    %314 = vmatprep.subr.mxu0 0.0
    %315 = vmatpush1.msra.mxu0 %v261
    %316 = vmatprep.subr.mxu0 0.0
    %317 = vmatpush1.msra.mxu0 %v260
    %318 = vmatprep.subr.mxu0 0.0
    %319 = vmatpush2.msra.mxu0 0.0
    %320 = vmatprep.subr.mxu0 0.0
    %321 = vmatpush2.msra.mxu0 0.0
    %322 = vmatprep.subr.mxu0 0.0
    %323 = vmatpush2.msra.mxu0 0.0
    %324 = vmatprep.subr.mxu0 0.0
    %325 = vmatpush2.msra.mxu0 0.0
    %326 = vmatprep.subr.mxu0 0.0
    %327 = vmatpush2.msra.mxu0 0.0
    %328 = vmatprep.subr.mxu0 0.0
    %329 = vmatpush2.msra.mxu0 0.0
    %330 = vmatprep.subr.mxu0 0.0
    %331 = vmatpush2.msra.mxu0 0.0
    %332 = vmatprep.subr.mxu0 0.0
    %333 = vmatpush2.msra.mxu0 0.0
    %334 = vmatprep.subr.mxu0 0.0
    %335 = vmatpush2.msra.mxu0 0.0
    %336 = vmatprep.subr.mxu0 0.0
    %337 = vmatpush2.msra.mxu0 0.0
    %338 = vmatprep.subr.mxu0 0.0
    %339 = vmatpush2.msra.mxu0 0.0
    %340 = vmatprep.subr.mxu0 0.0
    %341 = vmatpush2.msra.mxu0 0.0
    %342 = vmatprep.subr.mxu0 0.0
    %343 = vmatpush2.msra.mxu0 0.0
    %344 = vmatprep.subr.mxu0 0.0
    %345 = vmatpush2.msra.mxu0 0.0
    %346 = vmatprep.subr.mxu0 0.0
    %347 = vmatpush2.msra.mxu0 0.0
    %348 = vmatprep.subr.mxu0 0.0
    %349 = vmatpush2.msra.mxu0 0.0
    %350 = vmatprep.mubr.f32.mxu0 0.0
    %351 = vmatmul.mubr.f32.gmra.mxu0 %v259
    %v352 = vpop.f32.mrf.mxu0
    %v353 = vadd.f32 %v284, %v352
    %v354 = vpop.f32.mrf.mxu0
    %355 = vdwg.mxu0
    %vm356 = vcmask 25600
    %v357 = vsel %vm356, %v353, -inf
    %358 = vmax.xlane.f32.xlu0 %v357
    %v359 = vpop.xlane.xlu0 %358
    %v360 = vsub.f32 %v353, %v359
    %v361 = vmul.f32 %v360, 1.442695
    %v362 = vpow.pop %v361
    %v363 = vsel %vm356, %v362, 0.0
    %364 = vadd.xlane.f32.xlu0 %v363
    %v365 = vpop.xlane.xlu0 %364
    %v366 = vrcp.pop %v365
    %v367 = vmul.f32 %v362, %v366
    %v368 = vld [vmem:[%s9] sm:$0xf]
    %vm369 = vcmask 31744
    %v371 = vsel %vm369, %v367, 0
    %vm373 = vcmask 1043456
    %v375 = vsel %vm373, %v368, 0
    %377 = vmatprep.subr.mxu0 0.0
    %378 = vmatpush1.msra.mxu0 0.0
    %379 = vmatprep.subr.mxu0 0.0
    %380 = vmatpush1.msra.mxu0 0.0
    %381 = vmatprep.subr.mxu0 0.0
    %382 = vmatpush1.msra.mxu0 0.0
    %383 = vmatprep.subr.mxu0 0.0
    %384 = vmatpush1.msra.mxu0 0.0
    %385 = vmatprep.subr.mxu0 0.0
    %386 = vmatpush1.msra.mxu0 0.0
    %387 = vmatprep.subr.mxu0 0.0
    %388 = vmatpush1.msra.mxu0 0.0
    %389 = vmatprep.subr.mxu0 0.0
    %390 = vmatpush1.msra.mxu0 0.0
    %391 = vmatprep.subr.mxu0 0.0
    %392 = vmatpush1.msra.mxu0 0.0
    %393 = vmatprep.subr.mxu0 0.0
    %394 = vmatpush1.msra.mxu0 0.0
    %395 = vmatprep.subr.mxu0 0.0
    %396 = vmatpush1.msra.mxu0 0.0
    %397 = vmatprep.subr.mxu0 0.0
    %398 = vmatpush1.msra.mxu0 0.0
    %399 = vmatprep.subr.mxu0 0.0
    %400 = vmatpush1.msra.mxu0 0.0
    %401 = vmatprep.subr.mxu0 0.0
    %402 = vmatpush1.msra.mxu0 0.0
    %403 = vmatprep.subr.mxu0 0.0
    %404 = vmatpush1.msra.mxu0 0.0
    %405 = vmatprep.subr.mxu0 0.0
    %406 = vmatpush1.msra.mxu0 0.0
    %407 = vmatprep.subr.mxu0 0.0
    %408 = vmatpush1.msra.mxu0 %v375
    %409 = vmatprep.subr.mxu0 0.0
    %410 = vmatpush2.msra.mxu0 0.0
    %411 = vmatprep.subr.mxu0 0.0
    %412 = vmatpush2.msra.mxu0 0.0
    %413 = vmatprep.subr.mxu0 0.0
    %414 = vmatpush2.msra.mxu0 0.0
    %415 = vmatprep.subr.mxu0 0.0
    %416 = vmatpush2.msra.mxu0 0.0
    %417 = vmatprep.subr.mxu0 0.0
    %418 = vmatpush2.msra.mxu0 0.0
    %419 = vmatprep.subr.mxu0 0.0
    %420 = vmatpush2.msra.mxu0 0.0
    %421 = vmatprep.subr.mxu0 0.0
    %422 = vmatpush2.msra.mxu0 0.0
    %423 = vmatprep.subr.mxu0 0.0
    %424 = vmatpush2.msra.mxu0 0.0
    %425 = vmatprep.subr.mxu0 0.0
    %426 = vmatpush2.msra.mxu0 0.0
    %427 = vmatprep.subr.mxu0 0.0
    %428 = vmatpush2.msra.mxu0 0.0
    %429 = vmatprep.subr.mxu0 0.0
    %430 = vmatpush2.msra.mxu0 0.0
    %431 = vmatprep.subr.mxu0 0.0
    %432 = vmatpush2.msra.mxu0 0.0
    %433 = vmatprep.subr.mxu0 0.0
    %434 = vmatpush2.msra.mxu0 0.0
    %435 = vmatprep.subr.mxu0 0.0
    %436 = vmatpush2.msra.mxu0 0.0
    %437 = vmatprep.subr.mxu0 0.0
    %438 = vmatpush2.msra.mxu0 0.0
    %439 = vmatprep.subr.mxu0 0.0
    %440 = vmatpush2.msra.mxu0 0.0
    %441 = vmatprep.mubr.f32.mxu0 0.0
    %442 = vmatmul.mubr.f32.gmra.mxu0 %v371
    %v443 = vpop.f32.mrf.mxu0
    %v444 = vadd.f32 0.0, %v443
    %v445 = vpop.f32.mrf.mxu0
    %446 = vdwg.mxu0
    %v447 = vld [vmem:[%s7] sm:$0xff]
    %v448 = vld [vmem:[%s7 + $0x8] sm:$0xff]
    %v449 = vld [vmem:[%s7 + $0x10] sm:$0xff]
    %v450 = vld [vmem:[%s7 + $0x18] sm:$0xff]
    %v451 = vld [vmem:[%s7 + $0x20] sm:$0xff]
    %v452 = vld [vmem:[%s7 + $0x28] sm:$0xff]
    %v453 = vld [vmem:[%s7 + $0x30] sm:$0xff]
    %v454 = vld [vmem:[%s7 + $0x38] sm:$0xff]
    %v455 = vld [vmem:[%s7 + $0x40] sm:$0xff]
    %v456 = vld [vmem:[%s7 + $0x48] sm:$0xff]
    %v457 = vld [vmem:[%s7 + $0x50] sm:$0xff]
    %v458 = vld [vmem:[%s7 + $0x58] sm:$0xff]
    %v459 = vld [vmem:[%s7 + $0x60] sm:$0xff]
    %v460 = vld [vmem:[%s7 + $0x68] sm:$0xff]
    %v461 = vld [vmem:[%s7 + $0x70] sm:$0xff]
    %v462 = vld [vmem:[%s7 + $0x78] sm:$0xff]
    %v463 = vld [vmem:[%s8] sm:$0x1]
    %v465 = vlaneseq
    %v466 = vshrl.u32 %v465, 7
    %v467 = vsub.s32 0, %v466
    %v468 = vrot.slane %v463, %v467
    %470 = vmatprep.subr.mxu0 0.0
    %471 = vmatpush1.msra.mxu0 %v462
    %472 = vmatprep.subr.mxu0 0.0
    %473 = vmatpush1.msra.mxu0 %v461
    %474 = vmatprep.subr.mxu0 0.0
    %475 = vmatpush1.msra.mxu0 %v460
    %476 = vmatprep.subr.mxu0 0.0
    %477 = vmatpush1.msra.mxu0 %v459
    %478 = vmatprep.subr.mxu0 0.0
    %479 = vmatpush1.msra.mxu0 %v458
    %480 = vmatprep.subr.mxu0 0.0
    %481 = vmatpush1.msra.mxu0 %v457
    %482 = vmatprep.subr.mxu0 0.0
    %483 = vmatpush1.msra.mxu0 %v456
    %484 = vmatprep.subr.mxu0 0.0
    %485 = vmatpush1.msra.mxu0 %v455
    %486 = vmatprep.subr.mxu0 0.0
    %487 = vmatpush1.msra.mxu0 %v454
    %488 = vmatprep.subr.mxu0 0.0
    %489 = vmatpush1.msra.mxu0 %v453
    %490 = vmatprep.subr.mxu0 0.0
    %491 = vmatpush1.msra.mxu0 %v452
    %492 = vmatprep.subr.mxu0 0.0
    %493 = vmatpush1.msra.mxu0 %v451
    %494 = vmatprep.subr.mxu0 0.0
    %495 = vmatpush1.msra.mxu0 %v450
    %496 = vmatprep.subr.mxu0 0.0
    %497 = vmatpush1.msra.mxu0 %v449
    %498 = vmatprep.subr.mxu0 0.0
    %499 = vmatpush1.msra.mxu0 %v448
    %500 = vmatprep.subr.mxu0 0.0
    %501 = vmatpush1.msra.mxu0 %v447
    %502 = vmatprep.subr.mxu0 0.0
    %503 = vmatpush2.msra.mxu0 0.0
    %504 = vmatprep.subr.mxu0 0.0
    %505 = vmatpush2.msra.mxu0 0.0
    %506 = vmatprep.subr.mxu0 0.0
    %507 = vmatpush2.msra.mxu0 0.0
    %508 = vmatprep.subr.mxu0 0.0
    %509 = vmatpush2.msra.mxu0 0.0
    %510 = vmatprep.subr.mxu0 0.0
    %511 = vmatpush2.msra.mxu0 0.0
    %512 = vmatprep.subr.mxu0 0.0
    %513 = vmatpush2.msra.mxu0 0.0
    %514 = vmatprep.subr.mxu0 0.0
    %515 = vmatpush2.msra.mxu0 0.0
    %516 = vmatprep.subr.mxu0 0.0
    %517 = vmatpush2.msra.mxu0 0.0
    %518 = vmatprep.subr.mxu0 0.0
    %519 = vmatpush2.msra.mxu0 0.0
    %520 = vmatprep.subr.mxu0 0.0
    %521 = vmatpush2.msra.mxu0 0.0
    %522 = vmatprep.subr.mxu0 0.0
    %523 = vmatpush2.msra.mxu0 0.0
    %524 = vmatprep.subr.mxu0 0.0
    %525 = vmatpush2.msra.mxu0 0.0
    %526 = vmatprep.subr.mxu0 0.0
    %527 = vmatpush2.msra.mxu0 0.0
    %528 = vmatprep.subr.mxu0 0.0
    %529 = vmatpush2.msra.mxu0 0.0
    %530 = vmatprep.subr.mxu0 0.0
    %531 = vmatpush2.msra.mxu0 0.0
    %532 = vmatprep.subr.mxu0 0.0
    %533 = vmatpush2.msra.mxu0 0.0
    %534 = vmatprep.mubr.f32.mxu0 0.0
    %535 = vmatmul.mubr.f32.gmra.mxu0 %v259
    %v536 = vpop.f32.mrf.mxu0
    %v537 = vadd.f32 %v468, %v536
    %v538 = vpop.f32.mrf.mxu0
    %539 = vdwg.mxu0
    %v540 = vmul.f32 %v444, %v537
    %v541 = vld [vmem:[%s10] sm:$0xff]
    %v542 = vld [vmem:[%s10 + $0x8] sm:$0xff]
    %v543 = vld [vmem:[%s10 + $0x10] sm:$0xff]
    %v544 = vld [vmem:[%s10 + $0x18] sm:$0xff]
    %v545 = vld [vmem:[%s10 + $0x20] sm:$0xff]
    %v546 = vld [vmem:[%s10 + $0x28] sm:$0xff]
    %v547 = vld [vmem:[%s10 + $0x30] sm:$0xff]
    %v548 = vld [vmem:[%s10 + $0x38] sm:$0xff]
    %v549 = vld [vmem:[%s10 + $0x40] sm:$0xff]
    %v550 = vld [vmem:[%s10 + $0x48] sm:$0xff]
    %v551 = vld [vmem:[%s10 + $0x50] sm:$0xff]
    %v552 = vld [vmem:[%s10 + $0x58] sm:$0xff]
    %v553 = vld [vmem:[%s10 + $0x60] sm:$0xff]
    %v554 = vld [vmem:[%s10 + $0x68] sm:$0xff]
    %v555 = vld [vmem:[%s10 + $0x70] sm:$0xff]
    %v556 = vld [vmem:[%s10 + $0x78] sm:$0xff]
    %v557 = vld [vmem:[%s10 + $0x80] sm:$0xff]
    %v558 = vld [vmem:[%s10 + $0x88] sm:$0xff]
    %v559 = vld [vmem:[%s10 + $0x90] sm:$0xff]
    %v560 = vld [vmem:[%s10 + $0x98] sm:$0xff]
    %v561 = vld [vmem:[%s10 + $0xa0] sm:$0xff]
    %v562 = vld [vmem:[%s10 + $0xa8] sm:$0xff]
    %v563 = vld [vmem:[%s10 + $0xb0] sm:$0xff]
    %v564 = vld [vmem:[%s10 + $0xb8] sm:$0xff]
    %v565 = vld [vmem:[%s10 + $0xc0] sm:$0xff]
    %v566 = vld [vmem:[%s10 + $0xc8] sm:$0xff]
    %v567 = vld [vmem:[%s10 + $0xd0] sm:$0xff]
    %v568 = vld [vmem:[%s10 + $0xd8] sm:$0xff]
    %v569 = vld [vmem:[%s10 + $0xe0] sm:$0xff]
    %v570 = vld [vmem:[%s10 + $0xe8] sm:$0xff]
    %v571 = vld [vmem:[%s10 + $0xf0] sm:$0xff]
    %v572 = vld [vmem:[%s10 + $0xf8] sm:$0xff]
    %v573 = vld [vmem:[%s11] sm:$0xff]
    %v574 = vld [vmem:[%s11 + $0x8] sm:$0xff]
    %v575 = vld [vmem:[%s11 + $0x10] sm:$0xff]
    %v576 = vld [vmem:[%s11 + $0x18] sm:$0xff]
    %v577 = vld [vmem:[%s11 + $0x20] sm:$0xff]
    %v578 = vld [vmem:[%s11 + $0x28] sm:$0xff]
    %v579 = vld [vmem:[%s11 + $0x30] sm:$0xff]
    %v580 = vld [vmem:[%s11 + $0x38] sm:$0xff]
    %v581 = vld [vmem:[%s11 + $0x40] sm:$0xff]
    %v582 = vld [vmem:[%s11 + $0x48] sm:$0xff]
    %v583 = vld [vmem:[%s11 + $0x50] sm:$0xff]
    %v584 = vld [vmem:[%s11 + $0x58] sm:$0xff]
    %v585 = vld [vmem:[%s11 + $0x60] sm:$0xff]
    %v586 = vld [vmem:[%s11 + $0x68] sm:$0xff]
    %v587 = vld [vmem:[%s11 + $0x70] sm:$0xff]
    %v588 = vld [vmem:[%s11 + $0x78] sm:$0xff]
    %v589 = vld [vmem:[%s11 + $0x80] sm:$0xff]
    %v590 = vld [vmem:[%s11 + $0x88] sm:$0xff]
    %v591 = vld [vmem:[%s11 + $0x90] sm:$0xff]
    %v592 = vld [vmem:[%s11 + $0x98] sm:$0xff]
    %v593 = vld [vmem:[%s11 + $0xa0] sm:$0xff]
    %v594 = vld [vmem:[%s11 + $0xa8] sm:$0xff]
    %v595 = vld [vmem:[%s11 + $0xb0] sm:$0xff]
    %v596 = vld [vmem:[%s11 + $0xb8] sm:$0xff]
    %v597 = vld [vmem:[%s11 + $0xc0] sm:$0xff]
    %v598 = vld [vmem:[%s11 + $0xc8] sm:$0xff]
    %v599 = vld [vmem:[%s11 + $0xd0] sm:$0xff]
    %v600 = vld [vmem:[%s11 + $0xd8] sm:$0xff]
    %v601 = vld [vmem:[%s11 + $0xe0] sm:$0xff]
    %v602 = vld [vmem:[%s11 + $0xe8] sm:$0xff]
    %v603 = vld [vmem:[%s11 + $0xf0] sm:$0xff]
    %v604 = vld [vmem:[%s11 + $0xf8] sm:$0xff]
    %605 = vmatprep.subr.mxu0 %v604
    %606 = vmatpush1.msra.mxu0 %v603
    %607 = vmatprep.subr.mxu0 %v602
    %608 = vmatpush1.msra.mxu0 %v601
    %609 = vmatprep.subr.mxu0 %v600
    %610 = vmatpush1.msra.mxu0 %v599
    %611 = vmatprep.subr.mxu0 %v598
    %612 = vmatpush1.msra.mxu0 %v597
    %613 = vmatprep.subr.mxu0 %v596
    %614 = vmatpush1.msra.mxu0 %v595
    %615 = vmatprep.subr.mxu0 %v594
    %616 = vmatpush1.msra.mxu0 %v593
    %617 = vmatprep.subr.mxu0 %v592
    %618 = vmatpush1.msra.mxu0 %v591
    %619 = vmatprep.subr.mxu0 %v590
    %620 = vmatpush1.msra.mxu0 %v589
    %621 = vmatprep.subr.mxu0 %v588
    %622 = vmatpush1.msra.mxu0 %v587
    %623 = vmatprep.subr.mxu0 %v586
    %624 = vmatpush1.msra.mxu0 %v585
    %625 = vmatprep.subr.mxu0 %v584
    %626 = vmatpush1.msra.mxu0 %v583
    %627 = vmatprep.subr.mxu0 %v582
    %628 = vmatpush1.msra.mxu0 %v581
    %629 = vmatprep.subr.mxu0 %v580
    %630 = vmatpush1.msra.mxu0 %v579
    %631 = vmatprep.subr.mxu0 %v578
    %632 = vmatpush1.msra.mxu0 %v577
    %633 = vmatprep.subr.mxu0 %v576
    %634 = vmatpush1.msra.mxu0 %v575
    %635 = vmatprep.subr.mxu0 %v574
    %636 = vmatpush1.msra.mxu0 %v573
    %637 = vmatprep.subr.mxu0 0.0
    %638 = vmatpush2.msra.mxu0 0.0
    %639 = vmatprep.subr.mxu0 0.0
    %640 = vmatpush2.msra.mxu0 0.0
    %641 = vmatprep.subr.mxu0 0.0
    %642 = vmatpush2.msra.mxu0 0.0
    %643 = vmatprep.subr.mxu0 0.0
    %644 = vmatpush2.msra.mxu0 0.0
    %645 = vmatprep.subr.mxu0 0.0
    %646 = vmatpush2.msra.mxu0 0.0
    %647 = vmatprep.subr.mxu0 0.0
    %648 = vmatpush2.msra.mxu0 0.0
    %649 = vmatprep.subr.mxu0 0.0
    %650 = vmatpush2.msra.mxu0 0.0
    %651 = vmatprep.subr.mxu0 0.0
    %652 = vmatpush2.msra.mxu0 0.0
    %653 = vmatprep.subr.mxu0 0.0
    %654 = vmatpush2.msra.mxu0 0.0
    %655 = vmatprep.subr.mxu0 0.0
    %656 = vmatpush2.msra.mxu0 0.0
    %657 = vmatprep.subr.mxu0 0.0
    %658 = vmatpush2.msra.mxu0 0.0
    %659 = vmatprep.subr.mxu0 0.0
    %660 = vmatpush2.msra.mxu0 0.0
    %661 = vmatprep.subr.mxu0 0.0
    %662 = vmatpush2.msra.mxu0 0.0
    %663 = vmatprep.subr.mxu0 0.0
    %664 = vmatpush2.msra.mxu0 0.0
    %665 = vmatprep.subr.mxu0 0.0
    %666 = vmatpush2.msra.mxu0 0.0
    %667 = vmatprep.subr.mxu0 0.0
    %668 = vmatpush2.msra.mxu0 0.0
    %669 = vmatprep.mubr.f32.mxu0 0.0
    %670 = vmatmul.mubr.f32.gmra.mxu0 %v540
    %v671 = vpop.f32.mrf.mxu0
    %v672 = vadd.f32 0.0, %v671
    %v673 = vpop.f32.mrf.mxu0
    %v674 = vadd.f32 0.0, %v673
    %675 = vdwg.mxu0
    %676 = vmatprep.subr.mxu0 %v572
    %677 = vmatpush1.msra.mxu0 %v571
    %678 = vmatprep.subr.mxu0 %v570
    %679 = vmatpush1.msra.mxu0 %v569
    %680 = vmatprep.subr.mxu0 %v568
    %681 = vmatpush1.msra.mxu0 %v567
    %682 = vmatprep.subr.mxu0 %v566
    %683 = vmatpush1.msra.mxu0 %v565
    %684 = vmatprep.subr.mxu0 %v564
    %685 = vmatpush1.msra.mxu0 %v563
    %686 = vmatprep.subr.mxu0 %v562
    %687 = vmatpush1.msra.mxu0 %v561
    %688 = vmatprep.subr.mxu0 %v560
    %689 = vmatpush1.msra.mxu0 %v559
    %690 = vmatprep.subr.mxu0 %v558
    %691 = vmatpush1.msra.mxu0 %v557
    %692 = vmatprep.subr.mxu0 %v556
    %693 = vmatpush1.msra.mxu0 %v555
    %694 = vmatprep.subr.mxu0 %v554
    %695 = vmatpush1.msra.mxu0 %v553
    %696 = vmatprep.subr.mxu0 %v552
    %697 = vmatpush1.msra.mxu0 %v551
    %698 = vmatprep.subr.mxu0 %v550
    %699 = vmatpush1.msra.mxu0 %v549
    %700 = vmatprep.subr.mxu0 %v548
    %701 = vmatpush1.msra.mxu0 %v547
    %702 = vmatprep.subr.mxu0 %v546
    %703 = vmatpush1.msra.mxu0 %v545
    %704 = vmatprep.subr.mxu0 %v544
    %705 = vmatpush1.msra.mxu0 %v543
    %706 = vmatprep.subr.mxu0 %v542
    %707 = vmatpush1.msra.mxu0 %v541
    %708 = vmatprep.subr.mxu0 0.0
    %709 = vmatpush2.msra.mxu0 0.0
    %710 = vmatprep.subr.mxu0 0.0
    %711 = vmatpush2.msra.mxu0 0.0
    %712 = vmatprep.subr.mxu0 0.0
    %713 = vmatpush2.msra.mxu0 0.0
    %714 = vmatprep.subr.mxu0 0.0
    %715 = vmatpush2.msra.mxu0 0.0
    %716 = vmatprep.subr.mxu0 0.0
    %717 = vmatpush2.msra.mxu0 0.0
    %718 = vmatprep.subr.mxu0 0.0
    %719 = vmatpush2.msra.mxu0 0.0
    %720 = vmatprep.subr.mxu0 0.0
    %721 = vmatpush2.msra.mxu0 0.0
    %722 = vmatprep.subr.mxu0 0.0
    %723 = vmatpush2.msra.mxu0 0.0
    %724 = vmatprep.subr.mxu0 0.0
    %725 = vmatpush2.msra.mxu0 0.0
    %726 = vmatprep.subr.mxu0 0.0
    %727 = vmatpush2.msra.mxu0 0.0
    %728 = vmatprep.subr.mxu0 0.0
    %729 = vmatpush2.msra.mxu0 0.0
    %730 = vmatprep.subr.mxu0 0.0
    %731 = vmatpush2.msra.mxu0 0.0
    %732 = vmatprep.subr.mxu0 0.0
    %733 = vmatpush2.msra.mxu0 0.0
    %734 = vmatprep.subr.mxu0 0.0
    %735 = vmatpush2.msra.mxu0 0.0
    %736 = vmatprep.subr.mxu0 0.0
    %737 = vmatpush2.msra.mxu0 0.0
    %738 = vmatprep.subr.mxu0 0.0
    %739 = vmatpush2.msra.mxu0 0.0
    %740 = vmatprep.mubr.f32.mxu0 0.0
    %741 = vmatmul.mubr.f32.gmra.mxu0 %v259
    %v742 = vpop.f32.mrf.mxu0
    %v743 = vadd.f32 %v672, %v742
    %v744 = vpop.f32.mrf.mxu0
    %v745 = vadd.f32 %v674, %v744
    %746 = vdwg.mxu0
    %v747 = vld [vmem:[%s12] sm:$0xff]
    %v748 = vld [vmem:[%s12 + $0x8] sm:$0xff]
    %v749 = vld [vmem:[%s12 + $0x10] sm:$0xff]
    %v750 = vld [vmem:[%s12 + $0x18] sm:$0xff]
    %v751 = vld [vmem:[%s12 + $0x20] sm:$0xff]
    %v752 = vld [vmem:[%s12 + $0x28] sm:$0xff]
    %v753 = vld [vmem:[%s12 + $0x30] sm:$0xff]
    %v754 = vld [vmem:[%s12 + $0x38] sm:$0xff]
    %v755 = vld [vmem:[%s12 + $0x40] sm:$0x3f]
    %v756 = vld [vmem:[%s12 + $0x48] sm:$0x3f]
    %v758 = vsel %vm91, %v755, 0
    %v761 = vsel %vm91, %v756, 0
    %763 = vmatprep.subr.mxu0 0.0
    %764 = vmatpush1.msra.mxu0 0.0
    %765 = vmatprep.subr.mxu0 0.0
    %766 = vmatpush1.msra.mxu0 0.0
    %767 = vmatprep.subr.mxu0 0.0
    %768 = vmatpush1.msra.mxu0 0.0
    %769 = vmatprep.subr.mxu0 0.0
    %770 = vmatpush1.msra.mxu0 0.0
    %771 = vmatprep.subr.mxu0 0.0
    %772 = vmatpush1.msra.mxu0 0.0
    %773 = vmatprep.subr.mxu0 0.0
    %774 = vmatpush1.msra.mxu0 0.0
    %775 = vmatprep.subr.mxu0 0.0
    %776 = vmatpush1.msra.mxu0 0.0
    %777 = vmatprep.subr.mxu0 0.0
    %778 = vmatpush1.msra.mxu0 0.0
    %779 = vmatprep.subr.mxu0 0.0
    %780 = vmatpush1.msra.mxu0 0.0
    %781 = vmatprep.subr.mxu0 0.0
    %782 = vmatpush1.msra.mxu0 0.0
    %783 = vmatprep.subr.mxu0 0.0
    %784 = vmatpush1.msra.mxu0 0.0
    %785 = vmatprep.subr.mxu0 %v761
    %786 = vmatpush1.msra.mxu0 %v758
    %787 = vmatprep.subr.mxu0 %v754
    %788 = vmatpush1.msra.mxu0 %v753
    %789 = vmatprep.subr.mxu0 %v752
    %790 = vmatpush1.msra.mxu0 %v751
    %791 = vmatprep.subr.mxu0 %v750
    %792 = vmatpush1.msra.mxu0 %v749
    %793 = vmatprep.subr.mxu0 %v748
    %794 = vmatpush1.msra.mxu0 %v747
    %795 = vmatprep.subr.mxu0 0.0
    %796 = vmatpush2.msra.mxu0 0.0
    %797 = vmatprep.subr.mxu0 0.0
    %798 = vmatpush2.msra.mxu0 0.0
    %799 = vmatprep.subr.mxu0 0.0
    %800 = vmatpush2.msra.mxu0 0.0
    %801 = vmatprep.subr.mxu0 0.0
    %802 = vmatpush2.msra.mxu0 0.0
    %803 = vmatprep.subr.mxu0 0.0
    %804 = vmatpush2.msra.mxu0 0.0
    %805 = vmatprep.subr.mxu0 0.0
    %806 = vmatpush2.msra.mxu0 0.0
    %807 = vmatprep.subr.mxu0 0.0
    %808 = vmatpush2.msra.mxu0 0.0
    %809 = vmatprep.subr.mxu0 0.0
    %810 = vmatpush2.msra.mxu0 0.0
    %811 = vmatprep.subr.mxu0 0.0
    %812 = vmatpush2.msra.mxu0 0.0
    %813 = vmatprep.subr.mxu0 0.0
    %814 = vmatpush2.msra.mxu0 0.0
    %815 = vmatprep.subr.mxu0 0.0
    %816 = vmatpush2.msra.mxu0 0.0
    %817 = vmatprep.subr.mxu0 0.0
    %818 = vmatpush2.msra.mxu0 0.0
    %819 = vmatprep.subr.mxu0 0.0
    %820 = vmatpush2.msra.mxu0 0.0
    %821 = vmatprep.subr.mxu0 0.0
    %822 = vmatpush2.msra.mxu0 0.0
    %823 = vmatprep.subr.mxu0 0.0
    %824 = vmatpush2.msra.mxu0 0.0
    %825 = vmatprep.subr.mxu0 0.0
    %826 = vmatpush2.msra.mxu0 0.0
    %827 = vmatprep.mubr.f32.mxu0 0.0
    %828 = vmatmul.mubr.f32.gmra.mxu0 %v89
    %v829 = vpop.f32.mrf.mxu0
    %v830 = vadd.f32 0.0, %v829
    %v831 = vpop.f32.mrf.mxu0
    %v832 = vadd.f32 0.0, %v831
    %833 = vdwg.mxu0
    %v834 = vadd.f32 %v743, %v830
    %v835 = vadd.f32 %v745, %v832
    %v836 = vld [vmem:[%s13] sm:$0x3]
    %v838 = vlaneseq
    %v839 = vshrl.u32 %v838, 7
    %v840 = vsub.s32 0, %v839
    %v841 = vrot.slane %v836, %v840
    %v842 = vlaneseq
    %v843 = vshrl.u32 %v842, 7
    %v844 = vsub.s32 1, %v843
    %v845 = vrot.slane %v836, %v844
    %v848 = vadd.f32 %v834, %v841
    %v849 = vadd.f32 %v835, %v845
    %v850 = vld [vmem:[%s14] sm:$0x3]
    %v851 = vld [vmem:[%s15] sm:$0x3]
    %vm852 = vcmask 1041408
    %v853 = vsel %vm852, %v848, 0.0
    %v854 = vsel %vm852, %v849, 0.0
    %v855 = vadd.f32 %v853, %v854
    %856 = vadd.xlane.f32.xlu0 %v855
    %v857 = vpop.xlane.xlu0 %856
    %v858 = vrcp.pop 256.0
    %v859 = vmul.f32 %v857, %v858
    %v860 = vsub.f32 %v848, %v859
    %v861 = vsub.f32 %v849, %v859
    %v862 = vmul.f32 %v860, %v860
    %v863 = vmul.f32 %v861, %v861
    %v864 = vsel %vm852, %v862, 0.0
    %v865 = vsel %vm852, %v863, 0.0
    %v866 = vadd.f32 %v864, %v865
    %867 = vadd.xlane.f32.xlu0 %v866
    %v868 = vpop.xlane.xlu0 %867
    %v869 = vmul.f32 %v868, %v858
    %v870 = vadd.f32 %v869, 1e-05
    %v871 = vrsqrt.pop %v870
    %v872 = vmul.f32 %v860, %v871
    %v873 = vmul.f32 %v861, %v871
    %v875 = vlaneseq
    %v876 = vshrl.u32 %v875, 7
    %v877 = vsub.s32 0, %v876
    %v878 = vrot.slane %v850, %v877
    %v879 = vlaneseq
    %v880 = vshrl.u32 %v879, 7
    %v881 = vsub.s32 1, %v880
    %v882 = vrot.slane %v850, %v881
    %v885 = vmul.f32 %v872, %v878
    %v886 = vmul.f32 %v873, %v882
    %v888 = vlaneseq
    %v889 = vshrl.u32 %v888, 7
    %v890 = vsub.s32 0, %v889
    %v891 = vrot.slane %v851, %v890
    %v892 = vlaneseq
    %v893 = vshrl.u32 %v892, 7
    %v894 = vsub.s32 1, %v893
    %v895 = vrot.slane %v851, %v894
    %v898 = vadd.f32 %v885, %v891
    %v899 = vadd.f32 %v886, %v895
    %v900 = vmax.f32 %v898, 0.0
    %v901 = vmax.f32 %v899, 0.0
    %v902 = vld [vmem:[%s16] sm:$0xff]
    %v903 = vld [vmem:[%s16 + $0x8] sm:$0xff]
    %v904 = vld [vmem:[%s16 + $0x10] sm:$0xff]
    %v905 = vld [vmem:[%s16 + $0x18] sm:$0xff]
    %v906 = vld [vmem:[%s16 + $0x20] sm:$0xff]
    %v907 = vld [vmem:[%s16 + $0x28] sm:$0xff]
    %v908 = vld [vmem:[%s16 + $0x30] sm:$0xff]
    %v909 = vld [vmem:[%s16 + $0x38] sm:$0xff]
    %v910 = vld [vmem:[%s16 + $0x40] sm:$0xff]
    %v911 = vld [vmem:[%s16 + $0x48] sm:$0xff]
    %v912 = vld [vmem:[%s16 + $0x50] sm:$0xff]
    %v913 = vld [vmem:[%s16 + $0x58] sm:$0xff]
    %v914 = vld [vmem:[%s16 + $0x60] sm:$0xff]
    %v915 = vld [vmem:[%s16 + $0x68] sm:$0xff]
    %v916 = vld [vmem:[%s16 + $0x70] sm:$0xff]
    %v917 = vld [vmem:[%s16 + $0x78] sm:$0xff]
    %v918 = vld [vmem:[%s16 + $0x80] sm:$0xff]
    %v919 = vld [vmem:[%s16 + $0x88] sm:$0xff]
    %v920 = vld [vmem:[%s16 + $0x90] sm:$0xff]
    %v921 = vld [vmem:[%s16 + $0x98] sm:$0xff]
    %v922 = vld [vmem:[%s16 + $0xa0] sm:$0xff]
    %v923 = vld [vmem:[%s16 + $0xa8] sm:$0xff]
    %v924 = vld [vmem:[%s16 + $0xb0] sm:$0xff]
    %v925 = vld [vmem:[%s16 + $0xb8] sm:$0xff]
    %v926 = vld [vmem:[%s16 + $0xc0] sm:$0xff]
    %v927 = vld [vmem:[%s16 + $0xc8] sm:$0xff]
    %v928 = vld [vmem:[%s16 + $0xd0] sm:$0xff]
    %v929 = vld [vmem:[%s16 + $0xd8] sm:$0xff]
    %v930 = vld [vmem:[%s16 + $0xe0] sm:$0xff]
    %v931 = vld [vmem:[%s16 + $0xe8] sm:$0xff]
    %v932 = vld [vmem:[%s16 + $0xf0] sm:$0xff]
    %v933 = vld [vmem:[%s16 + $0xf8] sm:$0xff]
    %v934 = vld [vmem:[%s17] sm:$0x1]
    %v936 = vlaneseq
    %v937 = vshrl.u32 %v936, 7
    %v938 = vsub.s32 0, %v937
    %v939 = vrot.slane %v934, %v938
    %941 = vmatprep.subr.mxu0 0.0
    %942 = vmatpush1.msra.mxu0 %v917
    %943 = vmatprep.subr.mxu0 0.0
    %944 = vmatpush1.msra.mxu0 %v916
    %945 = vmatprep.subr.mxu0 0.0
    %946 = vmatpush1.msra.mxu0 %v915
    %947 = vmatprep.subr.mxu0 0.0
    %948 = vmatpush1.msra.mxu0 %v914
    %949 = vmatprep.subr.mxu0 0.0
    %950 = vmatpush1.msra.mxu0 %v913
    %951 = vmatprep.subr.mxu0 0.0
    %952 = vmatpush1.msra.mxu0 %v912
    %953 = vmatprep.subr.mxu0 0.0
    %954 = vmatpush1.msra.mxu0 %v911
    %955 = vmatprep.subr.mxu0 0.0
    %956 = vmatpush1.msra.mxu0 %v910
    %957 = vmatprep.subr.mxu0 0.0
    %958 = vmatpush1.msra.mxu0 %v909
    %959 = vmatprep.subr.mxu0 0.0
    %960 = vmatpush1.msra.mxu0 %v908
    %961 = vmatprep.subr.mxu0 0.0
    %962 = vmatpush1.msra.mxu0 %v907
    %963 = vmatprep.subr.mxu0 0.0
    %964 = vmatpush1.msra.mxu0 %v906
    %965 = vmatprep.subr.mxu0 0.0
    %966 = vmatpush1.msra.mxu0 %v905
    %967 = vmatprep.subr.mxu0 0.0
    %968 = vmatpush1.msra.mxu0 %v904
    %969 = vmatprep.subr.mxu0 0.0
    %970 = vmatpush1.msra.mxu0 %v903
    %971 = vmatprep.subr.mxu0 0.0
    %972 = vmatpush1.msra.mxu0 %v902
    %973 = vmatprep.subr.mxu0 0.0
    %974 = vmatpush2.msra.mxu0 %v933
    %975 = vmatprep.subr.mxu0 0.0
    %976 = vmatpush2.msra.mxu0 %v932
    %977 = vmatprep.subr.mxu0 0.0
    %978 = vmatpush2.msra.mxu0 %v931
    %979 = vmatprep.subr.mxu0 0.0
    %980 = vmatpush2.msra.mxu0 %v930
    %981 = vmatprep.subr.mxu0 0.0
    %982 = vmatpush2.msra.mxu0 %v929
    %983 = vmatprep.subr.mxu0 0.0
    %984 = vmatpush2.msra.mxu0 %v928
    %985 = vmatprep.subr.mxu0 0.0
    %986 = vmatpush2.msra.mxu0 %v927
    %987 = vmatprep.subr.mxu0 0.0
    %988 = vmatpush2.msra.mxu0 %v926
    %989 = vmatprep.subr.mxu0 0.0
    %990 = vmatpush2.msra.mxu0 %v925
    %991 = vmatprep.subr.mxu0 0.0
    %992 = vmatpush2.msra.mxu0 %v924
    %993 = vmatprep.subr.mxu0 0.0
    %994 = vmatpush2.msra.mxu0 %v923
    %995 = vmatprep.subr.mxu0 0.0
    %996 = vmatpush2.msra.mxu0 %v922
    %997 = vmatprep.subr.mxu0 0.0
    %998 = vmatpush2.msra.mxu0 %v921
    %999 = vmatprep.subr.mxu0 0.0
    %1000 = vmatpush2.msra.mxu0 %v920
    %1001 = vmatprep.subr.mxu0 0.0
    %1002 = vmatpush2.msra.mxu0 %v919
    %1003 = vmatprep.subr.mxu0 0.0
    %1004 = vmatpush2.msra.mxu0 %v918
    %1005 = vmatprep.mubr.f32.mxu0 %v901
    %1006 = vmatmul.mubr.f32.gmra.mxu0 %v900
    %v1007 = vpop.f32.mrf.mxu0
    %v1008 = vadd.f32 %v939, %v1007
    %v1009 = vpop.f32.mrf.mxu0
    %1010 = vdwg.mxu0
    %v1011 = vld [vmem:[%s18] sm:$0x1]
    %v1012 = vld [vmem:[%s19] sm:$0x1]
    %v1013 = vsel %vm852, %v1008, 0.0
    %1014 = vadd.xlane.f32.xlu0 %v1013
    %v1015 = vpop.xlane.xlu0 %1014
    %v1016 = vrcp.pop 128.0
    %v1017 = vmul.f32 %v1015, %v1016
    %v1018 = vsub.f32 %v1008, %v1017
    %v1019 = vmul.f32 %v1018, %v1018
    %v1020 = vsel %vm852, %v1019, 0.0
    %1021 = vadd.xlane.f32.xlu0 %v1020
    %v1022 = vpop.xlane.xlu0 %1021
    %v1023 = vmul.f32 %v1022, %v1016
    %v1024 = vadd.f32 %v1023, 1e-05
    %v1025 = vrsqrt.pop %v1024
    %v1026 = vmul.f32 %v1018, %v1025
    %v1028 = vlaneseq
    %v1029 = vshrl.u32 %v1028, 7
    %v1030 = vsub.s32 0, %v1029
    %v1031 = vrot.slane %v1011, %v1030
    %v1033 = vmul.f32 %v1026, %v1031
    %v1035 = vlaneseq
    %v1036 = vshrl.u32 %v1035, 7
    %v1037 = vsub.s32 0, %v1036
    %v1038 = vrot.slane %v1012, %v1037
    %v1040 = vadd.f32 %v1033, %v1038
    %v1041 = vmax.f32 %v1040, 0.0
    %v1042 = vld [vmem:[%s20] sm:$0xff]
    %v1043 = vld [vmem:[%s20 + $0x8] sm:$0xff]
    %v1044 = vld [vmem:[%s20 + $0x10] sm:$0xff]
    %v1045 = vld [vmem:[%s20 + $0x18] sm:$0xff]
    %v1046 = vld [vmem:[%s20 + $0x20] sm:$0xff]
    %v1047 = vld [vmem:[%s20 + $0x28] sm:$0xff]
    %v1048 = vld [vmem:[%s20 + $0x30] sm:$0xff]
    %v1049 = vld [vmem:[%s20 + $0x38] sm:$0xff]
    %v1050 = vld [vmem:[%s20 + $0x40] sm:$0xff]
    %v1051 = vld [vmem:[%s20 + $0x48] sm:$0xff]
    %v1052 = vld [vmem:[%s20 + $0x50] sm:$0xff]
    %v1053 = vld [vmem:[%s20 + $0x58] sm:$0xff]
    %v1054 = vld [vmem:[%s20 + $0x60] sm:$0xff]
    %v1055 = vld [vmem:[%s20 + $0x68] sm:$0xff]
    %v1056 = vld [vmem:[%s20 + $0x70] sm:$0xff]
    %v1057 = vld [vmem:[%s20 + $0x78] sm:$0xff]
    %v1058 = vld [vmem:[%s21] sm:$0x1]
    %v1060 = vlaneseq
    %v1061 = vshrl.u32 %v1060, 7
    %v1062 = vsub.s32 0, %v1061
    %v1063 = vrot.slane %v1058, %v1062
    %1065 = vmatprep.subr.mxu0 0.0
    %1066 = vmatpush1.msra.mxu0 %v1057
    %1067 = vmatprep.subr.mxu0 0.0
    %1068 = vmatpush1.msra.mxu0 %v1056
    %1069 = vmatprep.subr.mxu0 0.0
    %1070 = vmatpush1.msra.mxu0 %v1055
    %1071 = vmatprep.subr.mxu0 0.0
    %1072 = vmatpush1.msra.mxu0 %v1054
    %1073 = vmatprep.subr.mxu0 0.0
    %1074 = vmatpush1.msra.mxu0 %v1053
    %1075 = vmatprep.subr.mxu0 0.0
    %1076 = vmatpush1.msra.mxu0 %v1052
    %1077 = vmatprep.subr.mxu0 0.0
    %1078 = vmatpush1.msra.mxu0 %v1051
    %1079 = vmatprep.subr.mxu0 0.0
    %1080 = vmatpush1.msra.mxu0 %v1050
    %1081 = vmatprep.subr.mxu0 0.0
    %1082 = vmatpush1.msra.mxu0 %v1049
    %1083 = vmatprep.subr.mxu0 0.0
    %1084 = vmatpush1.msra.mxu0 %v1048
    %1085 = vmatprep.subr.mxu0 0.0
    %1086 = vmatpush1.msra.mxu0 %v1047
    %1087 = vmatprep.subr.mxu0 0.0
    %1088 = vmatpush1.msra.mxu0 %v1046
    %1089 = vmatprep.subr.mxu0 0.0
    %1090 = vmatpush1.msra.mxu0 %v1045
    %1091 = vmatprep.subr.mxu0 0.0
    %1092 = vmatpush1.msra.mxu0 %v1044
    %1093 = vmatprep.subr.mxu0 0.0
    %1094 = vmatpush1.msra.mxu0 %v1043
    %1095 = vmatprep.subr.mxu0 0.0
    %1096 = vmatpush1.msra.mxu0 %v1042
    %1097 = vmatprep.subr.mxu0 0.0
    %1098 = vmatpush2.msra.mxu0 0.0
    %1099 = vmatprep.subr.mxu0 0.0
    %1100 = vmatpush2.msra.mxu0 0.0
    %1101 = vmatprep.subr.mxu0 0.0
    %1102 = vmatpush2.msra.mxu0 0.0
    %1103 = vmatprep.subr.mxu0 0.0
    %1104 = vmatpush2.msra.mxu0 0.0
    %1105 = vmatprep.subr.mxu0 0.0
    %1106 = vmatpush2.msra.mxu0 0.0
    %1107 = vmatprep.subr.mxu0 0.0
    %1108 = vmatpush2.msra.mxu0 0.0
    %1109 = vmatprep.subr.mxu0 0.0
    %1110 = vmatpush2.msra.mxu0 0.0
    %1111 = vmatprep.subr.mxu0 0.0
    %1112 = vmatpush2.msra.mxu0 0.0
    %1113 = vmatprep.subr.mxu0 0.0
    %1114 = vmatpush2.msra.mxu0 0.0
    %1115 = vmatprep.subr.mxu0 0.0
    %1116 = vmatpush2.msra.mxu0 0.0
    %1117 = vmatprep.subr.mxu0 0.0
    %1118 = vmatpush2.msra.mxu0 0.0
    %1119 = vmatprep.subr.mxu0 0.0
    %1120 = vmatpush2.msra.mxu0 0.0
    %1121 = vmatprep.subr.mxu0 0.0
    %1122 = vmatpush2.msra.mxu0 0.0
    %1123 = vmatprep.subr.mxu0 0.0
    %1124 = vmatpush2.msra.mxu0 0.0
    %1125 = vmatprep.subr.mxu0 0.0
    %1126 = vmatpush2.msra.mxu0 0.0
    %1127 = vmatprep.subr.mxu0 0.0
    %1128 = vmatpush2.msra.mxu0 0.0
    %1129 = vmatprep.mubr.f32.mxu0 0.0
    %1130 = vmatmul.mubr.f32.gmra.mxu0 %v1041
    %v1131 = vpop.f32.mrf.mxu0
    %v1132 = vadd.f32 %v1063, %v1131
    %v1133 = vpop.f32.mrf.mxu0
    %1134 = vdwg.mxu0
    %1135 = vst [vmem:[#allocation3] sm:$0x3] %v1132
    // Predicated region
    $region90: #{enhanced_portfolio_actor_forward.1} parent=1 // pred_check
      _
    $region91: #{enhanced_portfolio_actor_forward.1} parent=1 // pred_check_branch
      %1137 = sbr.rel (0) target = $region93
    $region92: #{enhanced_portfolio_actor_forward.1} parent=1 // pred_region
      %s1139 = ssub.s32 32, 32
      %1140 = vsyncadd [#allocation4], %s1139
      %s1142 = sshll.u32 [#allocation3], 4
      %s1143 = int_to_ptr.vmem [resolvable:$true] %s1142
      %1145 = dma.vmem_to_hbm [thread:$0]  %s1143, 32, %s22, [#allocation4]
    $region93: #{enhanced_portfolio_actor_forward.1} parent=1 // pred_fallthru
      _
    // Predicated region
    $region94: #{enhanced_portfolio_actor_forward.1} parent=1 // pred_check
      _
    $region95: #{enhanced_portfolio_actor_forward.1} parent=1 // pred_check_branch
      %1147 = sbr.rel (0) target = $region97
    $region96: #{enhanced_portfolio_actor_forward.1} parent=1 // pred_region
      %1148 = dma.done [#allocation4], 32
    $region97: #{enhanced_portfolio_actor_forward.1} parent=1 // pred_fallthru
      _
    %1149 = vsyncpa [#allocation4], 1

</llo_original>
